<compile_context>
chip_gen: v5e
topology: v5e:2x2
jax: 0.10.0
libtpu: 0.0.40
codegen_flags: <defaults>
</compile_context>

<pallas_src>
import functools

import jax
import jax.numpy as jnp
from jax.experimental import pallas as pl
from jax.experimental.pallas import tpu as pltpu


# ------------------------------ fused kernel --------------------------------

def _fused_gcn_kernel(a_gcn_ref, a_mean_ref, x_ref, w_ref, b_ref, o_ref,
                      *, in_ch, hid, out_ch):
    """Whole-network forward.

    w_ref: [n_w, R, C]  bf16 weight slab (consumed in a fixed static order).
    b_ref: [n_b, 1, Cb] f32  bias slab.
    """
    a_gcn = a_gcn_ref[...]     # [N, N] bf16, read once, reused by every layer
    a_mean = a_mean_ref[...]   # [N, N] bf16

    cnt = {"w": 0, "b": 0}

    def next_w(f_in, f_out):
        w = w_ref[cnt["w"]][:f_in, :f_out]          # static index + static slice
        cnt["w"] += 1
        return w

    def next_b(f_out):
        b = b_ref[cnt["b"]][:, :f_out]              # (1, f_out) f32
        cnt["b"] += 1
        return b

    def gcn(x_bf, f_in, f_out, relu):
        # GCNConv: A_hat @ (X @ W) + b   (f32 accumulation, f32 elementwise)
        w = next_w(f_in, f_out)
        b = next_b(f_out)
        h = jnp.dot(x_bf, w, preferred_element_type=jnp.float32)
        out = jnp.dot(a_gcn, h.astype(jnp.bfloat16),
                      preferred_element_type=jnp.float32) + b
        if relu:
            out = jnp.maximum(out, 0.0)
        return out

    def residual_block(x_bf, rin, rhid, rout):
        # ResidualGC: 4 x (GCNConv + ReLU + dropout[=id]) -> SAGEConv(concat)
        #             -> GCNConv
        x_i = x_bf
        h = gcn(x_bf, rin, rhid, True).astype(jnp.bfloat16)
        for _ in range(3):
            h = gcn(h, rhid, rhid, True).astype(jnp.bfloat16)
        # SAGEConv(mean): lin_l on the mean-aggregated concat (+bias), lin_r on
        # the root concat.  [Wl | Wr] fused column-wise -> ONE matmul per
        # operand with 2*rhid output lanes; concat([x_i, h]) handled via the
        # row-split (skip vs hidden halves); A_mean matmul reassociated so the
        # N*N product runs over the narrow output dim.
        w_s = next_w(rin, 2 * rhid)                  # skip-input rows
        w_h = next_w(rhid, 2 * rhid)                 # hidden-input rows
        b_l = next_b(rhid)
        p = (jnp.dot(x_i, w_s, preferred_element_type=jnp.float32)
             + jnp.dot(h, w_h, preferred_element_type=jnp.float32))
        lhs = p[:, :rhid]                            # lin_l half (aggregated)
        rt = p[:, rhid:]                             # lin_r half (root/self)
        agg = jnp.dot(a_mean, lhs.astype(jnp.bfloat16),
                      preferred_element_type=jnp.float32)
        h = (agg + b_l + rt).astype(jnp.bfloat16)
        return gcn(h, rhid, rout, False)             # convs[-1], no ReLU

    x = x_ref[...]                                   # bf16 [N, in_ch]
    x = gcn(x, in_ch, hid, False).astype(jnp.bfloat16)        # init_conv
    x = residual_block(x, hid, hid, hid).astype(jnp.bfloat16)  # res1
    x = gcn(x, hid, hid, False).astype(jnp.bfloat16)           # bridge (+dropout=id)
    x = residual_block(x, hid, hid, out_ch).astype(jnp.bfloat16)  # res2
    out = gcn(x, out_ch, out_ch, False)                        # final_conv (f32)
    o_ref[...] = out.astype(o_ref.dtype)


# ----------------------------- parameter setup ------------------------------

def _glorot(key, shape):
    fan_in, fan_out = shape
    lim = (6.0 / (fan_in + fan_out)) ** 0.5
    return jax.random.uniform(key, shape, jnp.float32, -lim, lim)


def _gcn_params(key, f_in, f_out):
    kw, kb = jax.random.split(key)
    return (_glorot(kw, (f_in, f_out)),
            jax.random.uniform(kb, (1, f_out), jnp.float32, -0.1, 0.1))


def _residual_gc_params(key, in_ch, hid, out_ch, skip_n=3):
    # convs: [GCNConv(in,hid)] + skip_n*[GCNConv(hid,hid)] + [GCNConv(hid,out)]
    keys = jax.random.split(key, skip_n + 5)
    convs = [_gcn_params(keys[0], in_ch, hid)]
    for i in range(skip_n):
        convs.append(_gcn_params(keys[1 + i], hid, hid))
    convs.append(_gcn_params(keys[skip_n + 1], hid, out_ch))
    sage_in = hid + in_ch
    return {
        "convs": convs,
        "wl": _glorot(keys[skip_n + 2], (sage_in, hid)),   # lin_l (aggregated)
        "wr": _glorot(keys[skip_n + 3], (sage_in, hid)),   # lin_r (root), no bias
        "bl": jax.random.uniform(keys[skip_n + 4], (1, hid), jnp.float32,
                                 -0.1, 0.1),
    }


def make_gcn_params(key, in_channels, hidden_channels, out_channels):
    k = jax.random.split(key, 5)
    return {
        "init": _gcn_params(k[0], in_channels, hidden_channels),
        "res1": _residual_gc_params(k[1], hidden_channels, hidden_channels,
                                    hidden_channels, 3),
        "bridge": _gcn_params(k[2], hidden_channels, hidden_channels),
        "res2": _residual_gc_params(k[3], hidden_channels, hidden_channels,
                                    out_channels, 3),
        "final": _gcn_params(k[4], out_channels, out_channels),
    }


# ----------------------------- parameter packing ----------------------------

def _round_up(v, m):
    return ((v + m - 1) // m) * m


def _pack_params(params):
    """Pack every weight/bias into two zero-padded slabs, in the exact order
    the kernel consumes them.  Weights -> bf16 [n_w, R, C]; biases -> f32
    [n_b, 1, Cb]."""
    weights, biases = [], []

    def add_gcn(p):
        w, b = p
        weights.append(w)
        biases.append(b)

    def add_res(p):
        for conv in p["convs"][:-1]:
            add_gcn(conv)
        wl, wr = p["wl"], p["wr"]
        hid = wl.shape[1]
        in_ch = wl.shape[0] - hid
        # Fuse lin_l / lin_r column-wise (single matmul per operand, 2*hid
        # output lanes) and split rows into skip-input / hidden-input halves
        # (block-matrix identity == torch.cat([x_i, x], 1) @ W).
        w_comb = jnp.concatenate([wl, wr], axis=1)     # (in_ch+hid, 2*hid)
        weights.append(w_comb[:in_ch])
        weights.append(w_comb[in_ch:])
        biases.append(p["bl"])
        add_gcn(p["convs"][-1])

    add_gcn(params["init"])
    add_res(params["res1"])
    add_gcn(params["bridge"])
    add_res(params["res2"])
    add_gcn(params["final"])

    r_max = _round_up(max(w.shape[0] for w in weights), 8)
    c_max = _round_up(max(w.shape[1] for w in weights), 128)
    w_slab = jnp.stack([
        jnp.pad(w, ((0, r_max - w.shape[0]), (0, c_max - w.shape[1])))
        for w in weights]).astype(jnp.bfloat16)

    cb = _round_up(max(b.shape[1] for b in biases), 128)
    b_slab = jnp.stack([
        jnp.pad(b, ((0, 0), (0, cb - b.shape[1]))) for b in biases])
    return w_slab, b_slab


# ------------------------------- forward pass -------------------------------

def gcn_forward(x, a_gcn, a_mean, params):
    n = x.shape[0]
    in_ch = params["init"][0].shape[0]
    hid = params["init"][0].shape[1]
    out_ch = params["final"][0].shape[1]

    w_slab, b_slab = _pack_params(params)
    kernel = functools.partial(_fused_gcn_kernel,
                               in_ch=in_ch, hid=hid, out_ch=out_ch)

    inputs = [a_gcn.astype(jnp.bfloat16),
              a_mean.astype(jnp.bfloat16),
              x.astype(jnp.bfloat16),
              w_slab, b_slab]

    # Single kernel invocation (no grid): every input lives in VMEM exactly
    # once (no double-buffering), output is written back once.
    vmem = pltpu.MemorySpace.VMEM
    return pl.pallas_call(
        kernel,
        out_shape=jax.ShapeDtypeStruct((n, out_ch), jnp.float32),
        in_specs=[pl.BlockSpec(memory_space=vmem) for _ in inputs],
        out_specs=pl.BlockSpec(memory_space=vmem),
        compiler_params=pltpu.CompilerParams(
            vmem_limit_bytes=48 * 1024 * 1024),
    )(*inputs)


# --------------------------- pure-JAX f32 reference --------------------------

def _gcn_ref(x, a_gcn, p):
    w, b = p
    return a_gcn @ (x @ w) + b


def _res_ref(x, a_gcn, a_mean, p):
    x_i = x
    h = x
    for conv in p["convs"][:-1]:
        h = jnp.maximum(_gcn_ref(h, a_gcn, conv), 0.0)
    cat = jnp.concatenate([x_i, h], axis=1)
    h = a_mean @ (cat @ p["wl"]) + p["bl"] + cat @ p["wr"]
    return _gcn_ref(h, a_gcn, p["convs"][-1])


def gcn_forward_ref(x, a_gcn, a_mean, params):
    x = _gcn_ref(x, a_gcn, params["init"])
    x = _res_ref(x, a_gcn, a_mean, params["res1"])
    x = _gcn_ref(x, a_gcn, params["bridge"])
    x = _res_ref(x, a_gcn, a_mean, params["res2"])
    return _gcn_ref(x, a_gcn, params["final"])


# ----------------------------------- main ------------------------------------

def _build_adjacency(key, n):
    # random symmetric binary adjacency, no self loops
    upper = (jax.random.uniform(key, (n, n)) < 0.15).astype(jnp.float32)
    upper = jnp.triu(upper, k=1)
    a = upper + upper.T
    # GCN normalization: D^{-1/2} (A + I) D^{-1/2}
    a_tilde = a + jnp.eye(n, dtype=jnp.float32)
    deg = jnp.sum(a_tilde, axis=1)
    d_inv_sqrt = 1.0 / jnp.sqrt(deg)
    a_gcn = a_tilde * d_inv_sqrt[:, None] * d_inv_sqrt[None, :]
    # SAGE mean aggregation: row-normalized A (zero-degree safe)
    deg_a = jnp.maximum(jnp.sum(a, axis=1), 1.0)
    a_mean = a / deg_a[:, None]
    return a_gcn, a_mean


if __name__ == "__main__":
    N = 64              # nodes
    IN_CHANNELS = 16    # dataset.num_node_features (synthetic)
    HIDDEN = 32         # hidden_channels (scaled down from 256)
    OUT_CHANNELS = 8    # dataset.num_classes (synthetic)

    root = jax.random.PRNGKey(0)
    k_x, k_adj, k_params = jax.random.split(root, 3)

    x = jax.random.normal(k_x, (N, IN_CHANNELS), jnp.float32)
    a_gcn, a_mean = _build_adjacency(k_adj, N)
    params = make_gcn_params(k_params, IN_CHANNELS, HIDDEN, OUT_CHANNELS)

    out = gcn_forward(x, a_gcn, a_mean, params)
    out = jax.block_until_ready(out)
    assert out.shape == (N, OUT_CHANNELS), out.shape
    assert bool(jnp.all(jnp.isfinite(out)))

    # Correctness vs. pure-JAX f32 reference (kernel uses bf16 operands with
    # f32 accumulation -> loose tolerance over ~17 chained matmuls).
    # TODO(synk): dropout (p=0.05) runs in eval mode (identity) on both sides.
    ref = gcn_forward_ref(x, a_gcn, a_mean, params)
    err = float(jnp.max(jnp.abs(out - ref)))
    scale = float(jnp.max(jnp.abs(ref)))
    assert err <= 0.05 * scale + 0.05, (err, scale)

    print("KERNEL_OK")
</pallas_src>

<mosaic_0001>
module attributes {stable_mosaic.version = 11 : i64} {
  func.func @_fused_gcn_kernel(%arg0: memref<64x64xbf16, #tpu.memory_space<vmem>>, %arg1: memref<64x64xbf16, #tpu.memory_space<vmem>>, %arg2: memref<64x16xbf16, #tpu.memory_space<vmem>>, %arg3: memref<17x32x128xbf16, #tpu.memory_space<vmem>>, %arg4: memref<15x1x128xf32, #tpu.memory_space<vmem>>, %arg5: memref<64x8xf32, #tpu.memory_space<vmem>>) attributes {dimension_semantics = [], scalar_prefetch = 0 : i64, scratch_operands = 0 : i64, tpu.core_type = #tpu.core_type<tc>} {
    %c0 = arith.constant 0 : index
    %c0_0 = arith.constant 0 : index
    %0 = vector.load %arg0[%c0, %c0_0] : memref<64x64xbf16, #tpu.memory_space<vmem>>, vector<64x64xbf16>
    %c0_1 = arith.constant 0 : index
    %c0_2 = arith.constant 0 : index
    %1 = vector.load %arg1[%c0_1, %c0_2] : memref<64x64xbf16, #tpu.memory_space<vmem>>, vector<64x64xbf16>
    %c0_3 = arith.constant 0 : index
    %c0_4 = arith.constant 0 : index
    %2 = vector.load %arg2[%c0_3, %c0_4] : memref<64x16xbf16, #tpu.memory_space<vmem>>, vector<64x16xbf16>
    %c0_5 = arith.constant 0 : index
    %c0_6 = arith.constant 0 : index
    %c0_7 = arith.constant 0 : index
    %3 = vector.load %arg3[%c0_5, %c0_6, %c0_7] : memref<17x32x128xbf16, #tpu.memory_space<vmem>>, vector<1x32x128xbf16>
    %4 = vector.shape_cast %3 : vector<1x32x128xbf16> to vector<32x128xbf16>
    %5 = vector.extract_strided_slice %4 {offsets = [0, 0], sizes = [16, 32], strides = [1, 1]} : vector<32x128xbf16> to vector<16x32xbf16>
    %c0_8 = arith.constant 0 : index
    %c0_9 = arith.constant 0 : index
    %c0_10 = arith.constant 0 : index
    %6 = vector.load %arg4[%c0_8, %c0_9, %c0_10] : memref<15x1x128xf32, #tpu.memory_space<vmem>>, vector<1x1x128xf32>
    %7 = vector.shape_cast %6 : vector<1x1x128xf32> to vector<1x128xf32>
    %8 = vector.extract_strided_slice %7 {offsets = [0, 0], sizes = [1, 32], strides = [1, 1]} : vector<1x128xf32> to vector<1x32xf32>
    %cst = arith.constant dense<0.000000e+00> : vector<64x32xf32>
    %9 = tpu.matmul %2, %5, %cst {dimension_numbers = #tpu.dot_dimension_numbers<[1], [0], [0], [1], [0, 0, 1, 1], [], []>} : vector<64x16xbf16>, vector<16x32xbf16>, vector<64x32xf32> -> vector<64x32xf32>
    %10 = arith.truncf %9 : vector<64x32xf32> to vector<64x32xbf16>
    %cst_11 = arith.constant dense<0.000000e+00> : vector<64x32xf32>
    %11 = tpu.matmul %0, %10, %cst_11 {dimension_numbers = #tpu.dot_dimension_numbers<[1], [0], [0], [1], [0, 0, 1, 1], [], []>} : vector<64x64xbf16>, vector<64x32xbf16>, vector<64x32xf32> -> vector<64x32xf32>
    %12 = vector.broadcast %8 : vector<1x32xf32> to vector<64x32xf32>
    %13 = arith.addf %11, %12 : vector<64x32xf32>
    %14 = arith.truncf %13 : vector<64x32xf32> to vector<64x32xbf16>
    %c1 = arith.constant 1 : index
    %c0_12 = arith.constant 0 : index
    %c0_13 = arith.constant 0 : index
    %15 = vector.load %arg3[%c1, %c0_12, %c0_13] : memref<17x32x128xbf16, #tpu.memory_space<vmem>>, vector<1x32x128xbf16>
    %16 = vector.shape_cast %15 : vector<1x32x128xbf16> to vector<32x128xbf16>
    %17 = vector.extract_strided_slice %16 {offsets = [0, 0], sizes = [32, 32], strides = [1, 1]} : vector<32x128xbf16> to vector<32x32xbf16>
    %c1_14 = arith.constant 1 : index
    %c0_15 = arith.constant 0 : index
    %c0_16 = arith.constant 0 : index
    %18 = vector.load %arg4[%c1_14, %c0_15, %c0_16] : memref<15x1x128xf32, #tpu.memory_space<vmem>>, vector<1x1x128xf32>
    %19 = vector.shape_cast %18 : vector<1x1x128xf32> to vector<1x128xf32>
    %20 = vector.extract_strided_slice %19 {offsets = [0, 0], sizes = [1, 32], strides = [1, 1]} : vector<1x128xf32> to vector<1x32xf32>
    %cst_17 = arith.constant dense<0.000000e+00> : vector<64x32xf32>
    %21 = tpu.matmul %14, %17, %cst_17 {dimension_numbers = #tpu.dot_dimension_numbers<[1], [0], [0], [1], [0, 0, 1, 1], [], []>} : vector<64x32xbf16>, vector<32x32xbf16>, vector<64x32xf32> -> vector<64x32xf32>
    %22 = arith.truncf %21 : vector<64x32xf32> to vector<64x32xbf16>
    %cst_18 = arith.constant dense<0.000000e+00> : vector<64x32xf32>
    %23 = tpu.matmul %0, %22, %cst_18 {dimension_numbers = #tpu.dot_dimension_numbers<[1], [0], [0], [1], [0, 0, 1, 1], [], []>} : vector<64x64xbf16>, vector<64x32xbf16>, vector<64x32xf32> -> vector<64x32xf32>
    %24 = vector.broadcast %20 : vector<1x32xf32> to vector<64x32xf32>
    %25 = arith.addf %23, %24 : vector<64x32xf32>
    %cst_19 = arith.constant 0.000000e+00 : f32
    %26 = vector.broadcast %cst_19 : f32 to vector<64x32xf32>
    %27 = arith.maximumf %25, %26 : vector<64x32xf32>
    %28 = arith.truncf %27 : vector<64x32xf32> to vector<64x32xbf16>
    %c2 = arith.constant 2 : index
    %c0_20 = arith.constant 0 : index
    %c0_21 = arith.constant 0 : index
    %29 = vector.load %arg3[%c2, %c0_20, %c0_21] : memref<17x32x128xbf16, #tpu.memory_space<vmem>>, vector<1x32x128xbf16>
    %30 = vector.shape_cast %29 : vector<1x32x128xbf16> to vector<32x128xbf16>
    %31 = vector.extract_strided_slice %30 {offsets = [0, 0], sizes = [32, 32], strides = [1, 1]} : vector<32x128xbf16> to vector<32x32xbf16>
    %c2_22 = arith.constant 2 : index
    %c0_23 = arith.constant 0 : index
    %c0_24 = arith.constant 0 : index
    %32 = vector.load %arg4[%c2_22, %c0_23, %c0_24] : memref<15x1x128xf32, #tpu.memory_space<vmem>>, vector<1x1x128xf32>
    %33 = vector.shape_cast %32 : vector<1x1x128xf32> to vector<1x128xf32>
    %34 = vector.extract_strided_slice %33 {offsets = [0, 0], sizes = [1, 32], strides = [1, 1]} : vector<1x128xf32> to vector<1x32xf32>
    %cst_25 = arith.constant dense<0.000000e+00> : vector<64x32xf32>
    %35 = tpu.matmul %28, %31, %cst_25 {dimension_numbers = #tpu.dot_dimension_numbers<[1], [0], [0], [1], [0, 0, 1, 1], [], []>} : vector<64x32xbf16>, vector<32x32xbf16>, vector<64x32xf32> -> vector<64x32xf32>
    %36 = arith.truncf %35 : vector<64x32xf32> to vector<64x32xbf16>
    %cst_26 = arith.constant dense<0.000000e+00> : vector<64x32xf32>
    %37 = tpu.matmul %0, %36, %cst_26 {dimension_numbers = #tpu.dot_dimension_numbers<[1], [0], [0], [1], [0, 0, 1, 1], [], []>} : vector<64x64xbf16>, vector<64x32xbf16>, vector<64x32xf32> -> vector<64x32xf32>
    %38 = vector.broadcast %34 : vector<1x32xf32> to vector<64x32xf32>
    %39 = arith.addf %37, %38 : vector<64x32xf32>
    %cst_27 = arith.constant 0.000000e+00 : f32
    %40 = vector.broadcast %cst_27 : f32 to vector<64x32xf32>
    %41 = arith.maximumf %39, %40 : vector<64x32xf32>
    %42 = arith.truncf %41 : vector<64x32xf32> to vector<64x32xbf16>
    %c3 = arith.constant 3 : index
    %c0_28 = arith.constant 0 : index
    %c0_29 = arith.constant 0 : index
    %43 = vector.load %arg3[%c3, %c0_28, %c0_29] : memref<17x32x128xbf16, #tpu.memory_space<vmem>>, vector<1x32x128xbf16>
    %44 = vector.shape_cast %43 : vector<1x32x128xbf16> to vector<32x128xbf16>
    %45 = vector.extract_strided_slice %44 {offsets = [0, 0], sizes = [32, 32], strides = [1, 1]} : vector<32x128xbf16> to vector<32x32xbf16>
    %c3_30 = arith.constant 3 : index
    %c0_31 = arith.constant 0 : index
    %c0_32 = arith.constant 0 : index
    %46 = vector.load %arg4[%c3_30, %c0_31, %c0_32] : memref<15x1x128xf32, #tpu.memory_space<vmem>>, vector<1x1x128xf32>
    %47 = vector.shape_cast %46 : vector<1x1x128xf32> to vector<1x128xf32>
    %48 = vector.extract_strided_slice %47 {offsets = [0, 0], sizes = [1, 32], strides = [1, 1]} : vector<1x128xf32> to vector<1x32xf32>
    %cst_33 = arith.constant dense<0.000000e+00> : vector<64x32xf32>
    %49 = tpu.matmul %42, %45, %cst_33 {dimension_numbers = #tpu.dot_dimension_numbers<[1], [0], [0], [1], [0, 0, 1, 1], [], []>} : vector<64x32xbf16>, vector<32x32xbf16>, vector<64x32xf32> -> vector<64x32xf32>
    %50 = arith.truncf %49 : vector<64x32xf32> to vector<64x32xbf16>
    %cst_34 = arith.constant dense<0.000000e+00> : vector<64x32xf32>
    %51 = tpu.matmul %0, %50, %cst_34 {dimension_numbers = #tpu.dot_dimension_numbers<[1], [0], [0], [1], [0, 0, 1, 1], [], []>} : vector<64x64xbf16>, vector<64x32xbf16>, vector<64x32xf32> -> vector<64x32xf32>
    %52 = vector.broadcast %48 : vector<1x32xf32> to vector<64x32xf32>
    %53 = arith.addf %51, %52 : vector<64x32xf32>
    %cst_35 = arith.constant 0.000000e+00 : f32
    %54 = vector.broadcast %cst_35 : f32 to vector<64x32xf32>
    %55 = arith.maximumf %53, %54 : vector<64x32xf32>
    %56 = arith.truncf %55 : vector<64x32xf32> to vector<64x32xbf16>
    %c4 = arith.constant 4 : index
    %c0_36 = arith.constant 0 : index
    %c0_37 = arith.constant 0 : index
    %57 = vector.load %arg3[%c4, %c0_36, %c0_37] : memref<17x32x128xbf16, #tpu.memory_space<vmem>>, vector<1x32x128xbf16>
    %58 = vector.shape_cast %57 : vector<1x32x128xbf16> to vector<32x128xbf16>
    %59 = vector.extract_strided_slice %58 {offsets = [0, 0], sizes = [32, 32], strides = [1, 1]} : vector<32x128xbf16> to vector<32x32xbf16>
    %c4_38 = arith.constant 4 : index
    %c0_39 = arith.constant 0 : index
    %c0_40 = arith.constant 0 : index
    %60 = vector.load %arg4[%c4_38, %c0_39, %c0_40] : memref<15x1x128xf32, #tpu.memory_space<vmem>>, vector<1x1x128xf32>
    %61 = vector.shape_cast %60 : vector<1x1x128xf32> to vector<1x128xf32>
    %62 = vector.extract_strided_slice %61 {offsets = [0, 0], sizes = [1, 32], strides = [1, 1]} : vector<1x128xf32> to vector<1x32xf32>
    %cst_41 = arith.constant dense<0.000000e+00> : vector<64x32xf32>
    %63 = tpu.matmul %56, %59, %cst_41 {dimension_numbers = #tpu.dot_dimension_numbers<[1], [0], [0], [1], [0, 0, 1, 1], [], []>} : vector<64x32xbf16>, vector<32x32xbf16>, vector<64x32xf32> -> vector<64x32xf32>
    %64 = arith.truncf %63 : vector<64x32xf32> to vector<64x32xbf16>
    %cst_42 = arith.constant dense<0.000000e+00> : vector<64x32xf32>
    %65 = tpu.matmul %0, %64, %cst_42 {dimension_numbers = #tpu.dot_dimension_numbers<[1], [0], [0], [1], [0, 0, 1, 1], [], []>} : vector<64x64xbf16>, vector<64x32xbf16>, vector<64x32xf32> -> vector<64x32xf32>
    %66 = vector.broadcast %62 : vector<1x32xf32> to vector<64x32xf32>
    %67 = arith.addf %65, %66 : vector<64x32xf32>
    %cst_43 = arith.constant 0.000000e+00 : f32
    %68 = vector.broadcast %cst_43 : f32 to vector<64x32xf32>
    %69 = arith.maximumf %67, %68 : vector<64x32xf32>
    %70 = arith.truncf %69 : vector<64x32xf32> to vector<64x32xbf16>
    %c5 = arith.constant 5 : index
    %c0_44 = arith.constant 0 : index
    %c0_45 = arith.constant 0 : index
    %71 = vector.load %arg3[%c5, %c0_44, %c0_45] : memref<17x32x128xbf16, #tpu.memory_space<vmem>>, vector<1x32x128xbf16>
    %72 = vector.shape_cast %71 : vector<1x32x128xbf16> to vector<32x128xbf16>
    %73 = vector.extract_strided_slice %72 {offsets = [0, 0], sizes = [32, 64], strides = [1, 1]} : vector<32x128xbf16> to vector<32x64xbf16>
    %c6 = arith.constant 6 : index
    %c0_46 = arith.constant 0 : index
    %c0_47 = arith.constant 0 : index
    %74 = vector.load %arg3[%c6, %c0_46, %c0_47] : memref<17x32x128xbf16, #tpu.memory_space<vmem>>, vector<1x32x128xbf16>
    %75 = vector.shape_cast %74 : vector<1x32x128xbf16> to vector<32x128xbf16>
    %76 = vector.extract_strided_slice %75 {offsets = [0, 0], sizes = [32, 64], strides = [1, 1]} : vector<32x128xbf16> to vector<32x64xbf16>
    %c5_48 = arith.constant 5 : index
    %c0_49 = arith.constant 0 : index
    %c0_50 = arith.constant 0 : index
    %77 = vector.load %arg4[%c5_48, %c0_49, %c0_50] : memref<15x1x128xf32, #tpu.memory_space<vmem>>, vector<1x1x128xf32>
    %78 = vector.shape_cast %77 : vector<1x1x128xf32> to vector<1x128xf32>
    %79 = vector.extract_strided_slice %78 {offsets = [0, 0], sizes = [1, 32], strides = [1, 1]} : vector<1x128xf32> to vector<1x32xf32>
    %cst_51 = arith.constant dense<0.000000e+00> : vector<64x64xf32>
    %80 = tpu.matmul %14, %73, %cst_51 {dimension_numbers = #tpu.dot_dimension_numbers<[1], [0], [0], [1], [0, 0, 1, 1], [], []>} : vector<64x32xbf16>, vector<32x64xbf16>, vector<64x64xf32> -> vector<64x64xf32>
    %cst_52 = arith.constant dense<0.000000e+00> : vector<64x64xf32>
    %81 = tpu.matmul %70, %76, %cst_52 {dimension_numbers = #tpu.dot_dimension_numbers<[1], [0], [0], [1], [0, 0, 1, 1], [], []>} : vector<64x32xbf16>, vector<32x64xbf16>, vector<64x64xf32> -> vector<64x64xf32>
    %82 = arith.addf %80, %81 : vector<64x64xf32>
    %83 = vector.extract_strided_slice %82 {offsets = [0, 0], sizes = [64, 32], strides = [1, 1]} : vector<64x64xf32> to vector<64x32xf32>
    %84 = vector.extract_strided_slice %82 {offsets = [0, 32], sizes = [64, 32], strides = [1, 1]} : vector<64x64xf32> to vector<64x32xf32>
    %85 = arith.truncf %83 : vector<64x32xf32> to vector<64x32xbf16>
    %cst_53 = arith.constant dense<0.000000e+00> : vector<64x32xf32>
    %86 = tpu.matmul %1, %85, %cst_53 {dimension_numbers = #tpu.dot_dimension_numbers<[1], [0], [0], [1], [0, 0, 1, 1], [], []>} : vector<64x64xbf16>, vector<64x32xbf16>, vector<64x32xf32> -> vector<64x32xf32>
    %87 = vector.broadcast %79 : vector<1x32xf32> to vector<64x32xf32>
    %88 = arith.addf %86, %87 : vector<64x32xf32>
    %89 = arith.addf %88, %84 : vector<64x32xf32>
    %90 = arith.truncf %89 : vector<64x32xf32> to vector<64x32xbf16>
    %c7 = arith.constant 7 : index
    %c0_54 = arith.constant 0 : index
    %c0_55 = arith.constant 0 : index
    %91 = vector.load %arg3[%c7, %c0_54, %c0_55] : memref<17x32x128xbf16, #tpu.memory_space<vmem>>, vector<1x32x128xbf16>
    %92 = vector.shape_cast %91 : vector<1x32x128xbf16> to vector<32x128xbf16>
    %93 = vector.extract_strided_slice %92 {offsets = [0, 0], sizes = [32, 32], strides = [1, 1]} : vector<32x128xbf16> to vector<32x32xbf16>
    %c6_56 = arith.constant 6 : index
    %c0_57 = arith.constant 0 : index
    %c0_58 = arith.constant 0 : index
    %94 = vector.load %arg4[%c6_56, %c0_57, %c0_58] : memref<15x1x128xf32, #tpu.memory_space<vmem>>, vector<1x1x128xf32>
    %95 = vector.shape_cast %94 : vector<1x1x128xf32> to vector<1x128xf32>
    %96 = vector.extract_strided_slice %95 {offsets = [0, 0], sizes = [1, 32], strides = [1, 1]} : vector<1x128xf32> to vector<1x32xf32>
    %cst_59 = arith.constant dense<0.000000e+00> : vector<64x32xf32>
    %97 = tpu.matmul %90, %93, %cst_59 {dimension_numbers = #tpu.dot_dimension_numbers<[1], [0], [0], [1], [0, 0, 1, 1], [], []>} : vector<64x32xbf16>, vector<32x32xbf16>, vector<64x32xf32> -> vector<64x32xf32>
    %98 = arith.truncf %97 : vector<64x32xf32> to vector<64x32xbf16>
    %cst_60 = arith.constant dense<0.000000e+00> : vector<64x32xf32>
    %99 = tpu.matmul %0, %98, %cst_60 {dimension_numbers = #tpu.dot_dimension_numbers<[1], [0], [0], [1], [0, 0, 1, 1], [], []>} : vector<64x64xbf16>, vector<64x32xbf16>, vector<64x32xf32> -> vector<64x32xf32>
    %100 = vector.broadcast %96 : vector<1x32xf32> to vector<64x32xf32>
    %101 = arith.addf %99, %100 : vector<64x32xf32>
    %102 = arith.truncf %101 : vector<64x32xf32> to vector<64x32xbf16>
    %c8 = arith.constant 8 : index
    %c0_61 = arith.constant 0 : index
    %c0_62 = arith.constant 0 : index
    %103 = vector.load %arg3[%c8, %c0_61, %c0_62] : memref<17x32x128xbf16, #tpu.memory_space<vmem>>, vector<1x32x128xbf16>
    %104 = vector.shape_cast %103 : vector<1x32x128xbf16> to vector<32x128xbf16>
    %105 = vector.extract_strided_slice %104 {offsets = [0, 0], sizes = [32, 32], strides = [1, 1]} : vector<32x128xbf16> to vector<32x32xbf16>
    %c7_63 = arith.constant 7 : index
    %c0_64 = arith.constant 0 : index
    %c0_65 = arith.constant 0 : index
    %106 = vector.load %arg4[%c7_63, %c0_64, %c0_65] : memref<15x1x128xf32, #tpu.memory_space<vmem>>, vector<1x1x128xf32>
    %107 = vector.shape_cast %106 : vector<1x1x128xf32> to vector<1x128xf32>
    %108 = vector.extract_strided_slice %107 {offsets = [0, 0], sizes = [1, 32], strides = [1, 1]} : vector<1x128xf32> to vector<1x32xf32>
    %cst_66 = arith.constant dense<0.000000e+00> : vector<64x32xf32>
    %109 = tpu.matmul %102, %105, %cst_66 {dimension_numbers = #tpu.dot_dimension_numbers<[1], [0], [0], [1], [0, 0, 1, 1], [], []>} : vector<64x32xbf16>, vector<32x32xbf16>, vector<64x32xf32> -> vector<64x32xf32>
    %110 = arith.truncf %109 : vector<64x32xf32> to vector<64x32xbf16>
    %cst_67 = arith.constant dense<0.000000e+00> : vector<64x32xf32>
    %111 = tpu.matmul %0, %110, %cst_67 {dimension_numbers = #tpu.dot_dimension_numbers<[1], [0], [0], [1], [0, 0, 1, 1], [], []>} : vector<64x64xbf16>, vector<64x32xbf16>, vector<64x32xf32> -> vector<64x32xf32>
    %112 = vector.broadcast %108 : vector<1x32xf32> to vector<64x32xf32>
    %113 = arith.addf %111, %112 : vector<64x32xf32>
    %114 = arith.truncf %113 : vector<64x32xf32> to vector<64x32xbf16>
    %c9 = arith.constant 9 : index
    %c0_68 = arith.constant 0 : index
    %c0_69 = arith.constant 0 : index
    %115 = vector.load %arg3[%c9, %c0_68, %c0_69] : memref<17x32x128xbf16, #tpu.memory_space<vmem>>, vector<1x32x128xbf16>
    %116 = vector.shape_cast %115 : vector<1x32x128xbf16> to vector<32x128xbf16>
    %117 = vector.extract_strided_slice %116 {offsets = [0, 0], sizes = [32, 32], strides = [1, 1]} : vector<32x128xbf16> to vector<32x32xbf16>
    %c8_70 = arith.constant 8 : index
    %c0_71 = arith.constant 0 : index
    %c0_72 = arith.constant 0 : index
    %118 = vector.load %arg4[%c8_70, %c0_71, %c0_72] : memref<15x1x128xf32, #tpu.memory_space<vmem>>, vector<1x1x128xf32>
    %119 = vector.shape_cast %118 : vector<1x1x128xf32> to vector<1x128xf32>
    %120 = vector.extract_strided_slice %119 {offsets = [0, 0], sizes = [1, 32], strides = [1, 1]} : vector<1x128xf32> to vector<1x32xf32>
    %cst_73 = arith.constant dense<0.000000e+00> : vector<64x32xf32>
    %121 = tpu.matmul %114, %117, %cst_73 {dimension_numbers = #tpu.dot_dimension_numbers<[1], [0], [0], [1], [0, 0, 1, 1], [], []>} : vector<64x32xbf16>, vector<32x32xbf16>, vector<64x32xf32> -> vector<64x32xf32>
    %122 = arith.truncf %121 : vector<64x32xf32> to vector<64x32xbf16>
    %cst_74 = arith.constant dense<0.000000e+00> : vector<64x32xf32>
    %123 = tpu.matmul %0, %122, %cst_74 {dimension_numbers = #tpu.dot_dimension_numbers<[1], [0], [0], [1], [0, 0, 1, 1], [], []>} : vector<64x64xbf16>, vector<64x32xbf16>, vector<64x32xf32> -> vector<64x32xf32>
    %124 = vector.broadcast %120 : vector<1x32xf32> to vector<64x32xf32>
    %125 = arith.addf %123, %124 : vector<64x32xf32>
    %cst_75 = arith.constant 0.000000e+00 : f32
    %126 = vector.broadcast %cst_75 : f32 to vector<64x32xf32>
    %127 = arith.maximumf %125, %126 : vector<64x32xf32>
    %128 = arith.truncf %127 : vector<64x32xf32> to vector<64x32xbf16>
    %c10 = arith.constant 10 : index
    %c0_76 = arith.constant 0 : index
    %c0_77 = arith.constant 0 : index
    %129 = vector.load %arg3[%c10, %c0_76, %c0_77] : memref<17x32x128xbf16, #tpu.memory_space<vmem>>, vector<1x32x128xbf16>
    %130 = vector.shape_cast %129 : vector<1x32x128xbf16> to vector<32x128xbf16>
    %131 = vector.extract_strided_slice %130 {offsets = [0, 0], sizes = [32, 32], strides = [1, 1]} : vector<32x128xbf16> to vector<32x32xbf16>
    %c9_78 = arith.constant 9 : index
    %c0_79 = arith.constant 0 : index
    %c0_80 = arith.constant 0 : index
    %132 = vector.load %arg4[%c9_78, %c0_79, %c0_80] : memref<15x1x128xf32, #tpu.memory_space<vmem>>, vector<1x1x128xf32>
    %133 = vector.shape_cast %132 : vector<1x1x128xf32> to vector<1x128xf32>
    %134 = vector.extract_strided_slice %133 {offsets = [0, 0], sizes = [1, 32], strides = [1, 1]} : vector<1x128xf32> to vector<1x32xf32>
    %cst_81 = arith.constant dense<0.000000e+00> : vector<64x32xf32>
    %135 = tpu.matmul %128, %131, %cst_81 {dimension_numbers = #tpu.dot_dimension_numbers<[1], [0], [0], [1], [0, 0, 1, 1], [], []>} : vector<64x32xbf16>, vector<32x32xbf16>, vector<64x32xf32> -> vector<64x32xf32>
    %136 = arith.truncf %135 : vector<64x32xf32> to vector<64x32xbf16>
    %cst_82 = arith.constant dense<0.000000e+00> : vector<64x32xf32>
    %137 = tpu.matmul %0, %136, %cst_82 {dimension_numbers = #tpu.dot_dimension_numbers<[1], [0], [0], [1], [0, 0, 1, 1], [], []>} : vector<64x64xbf16>, vector<64x32xbf16>, vector<64x32xf32> -> vector<64x32xf32>
    %138 = vector.broadcast %134 : vector<1x32xf32> to vector<64x32xf32>
    %139 = arith.addf %137, %138 : vector<64x32xf32>
    %cst_83 = arith.constant 0.000000e+00 : f32
    %140 = vector.broadcast %cst_83 : f32 to vector<64x32xf32>
    %141 = arith.maximumf %139, %140 : vector<64x32xf32>
    %142 = arith.truncf %141 : vector<64x32xf32> to vector<64x32xbf16>
    %c11 = arith.constant 11 : index
    %c0_84 = arith.constant 0 : index
    %c0_85 = arith.constant 0 : index
    %143 = vector.load %arg3[%c11, %c0_84, %c0_85] : memref<17x32x128xbf16, #tpu.memory_space<vmem>>, vector<1x32x128xbf16>
    %144 = vector.shape_cast %143 : vector<1x32x128xbf16> to vector<32x128xbf16>
    %145 = vector.extract_strided_slice %144 {offsets = [0, 0], sizes = [32, 32], strides = [1, 1]} : vector<32x128xbf16> to vector<32x32xbf16>
    %c10_86 = arith.constant 10 : index
    %c0_87 = arith.constant 0 : index
    %c0_88 = arith.constant 0 : index
    %146 = vector.load %arg4[%c10_86, %c0_87, %c0_88] : memref<15x1x128xf32, #tpu.memory_space<vmem>>, vector<1x1x128xf32>
    %147 = vector.shape_cast %146 : vector<1x1x128xf32> to vector<1x128xf32>
    %148 = vector.extract_strided_slice %147 {offsets = [0, 0], sizes = [1, 32], strides = [1, 1]} : vector<1x128xf32> to vector<1x32xf32>
    %cst_89 = arith.constant dense<0.000000e+00> : vector<64x32xf32>
    %149 = tpu.matmul %142, %145, %cst_89 {dimension_numbers = #tpu.dot_dimension_numbers<[1], [0], [0], [1], [0, 0, 1, 1], [], []>} : vector<64x32xbf16>, vector<32x32xbf16>, vector<64x32xf32> -> vector<64x32xf32>
    %150 = arith.truncf %149 : vector<64x32xf32> to vector<64x32xbf16>
    %cst_90 = arith.constant dense<0.000000e+00> : vector<64x32xf32>
    %151 = tpu.matmul %0, %150, %cst_90 {dimension_numbers = #tpu.dot_dimension_numbers<[1], [0], [0], [1], [0, 0, 1, 1], [], []>} : vector<64x64xbf16>, vector<64x32xbf16>, vector<64x32xf32> -> vector<64x32xf32>
    %152 = vector.broadcast %148 : vector<1x32xf32> to vector<64x32xf32>
    %153 = arith.addf %151, %152 : vector<64x32xf32>
    %cst_91 = arith.constant 0.000000e+00 : f32
    %154 = vector.broadcast %cst_91 : f32 to vector<64x32xf32>
    %155 = arith.maximumf %153, %154 : vector<64x32xf32>
    %156 = arith.truncf %155 : vector<64x32xf32> to vector<64x32xbf16>
    %c12 = arith.constant 12 : index
    %c0_92 = arith.constant 0 : index
    %c0_93 = arith.constant 0 : index
    %157 = vector.load %arg3[%c12, %c0_92, %c0_93] : memref<17x32x128xbf16, #tpu.memory_space<vmem>>, vector<1x32x128xbf16>
    %158 = vector.shape_cast %157 : vector<1x32x128xbf16> to vector<32x128xbf16>
    %159 = vector.extract_strided_slice %158 {offsets = [0, 0], sizes = [32, 32], strides = [1, 1]} : vector<32x128xbf16> to vector<32x32xbf16>
    %c11_94 = arith.constant 11 : index
    %c0_95 = arith.constant 0 : index
    %c0_96 = arith.constant 0 : index
    %160 = vector.load %arg4[%c11_94, %c0_95, %c0_96] : memref<15x1x128xf32, #tpu.memory_space<vmem>>, vector<1x1x128xf32>
    %161 = vector.shape_cast %160 : vector<1x1x128xf32> to vector<1x128xf32>
    %162 = vector.extract_strided_slice %161 {offsets = [0, 0], sizes = [1, 32], strides = [1, 1]} : vector<1x128xf32> to vector<1x32xf32>
    %cst_97 = arith.constant dense<0.000000e+00> : vector<64x32xf32>
    %163 = tpu.matmul %156, %159, %cst_97 {dimension_numbers = #tpu.dot_dimension_numbers<[1], [0], [0], [1], [0, 0, 1, 1], [], []>} : vector<64x32xbf16>, vector<32x32xbf16>, vector<64x32xf32> -> vector<64x32xf32>
    %164 = arith.truncf %163 : vector<64x32xf32> to vector<64x32xbf16>
    %cst_98 = arith.constant dense<0.000000e+00> : vector<64x32xf32>
    %165 = tpu.matmul %0, %164, %cst_98 {dimension_numbers = #tpu.dot_dimension_numbers<[1], [0], [0], [1], [0, 0, 1, 1], [], []>} : vector<64x64xbf16>, vector<64x32xbf16>, vector<64x32xf32> -> vector<64x32xf32>
    %166 = vector.broadcast %162 : vector<1x32xf32> to vector<64x32xf32>
    %167 = arith.addf %165, %166 : vector<64x32xf32>
    %cst_99 = arith.constant 0.000000e+00 : f32
    %168 = vector.broadcast %cst_99 : f32 to vector<64x32xf32>
    %169 = arith.maximumf %167, %168 : vector<64x32xf32>
    %170 = arith.truncf %169 : vector<64x32xf32> to vector<64x32xbf16>
    %c13 = arith.constant 13 : index
    %c0_100 = arith.constant 0 : index
    %c0_101 = arith.constant 0 : index
    %171 = vector.load %arg3[%c13, %c0_100, %c0_101] : memref<17x32x128xbf16, #tpu.memory_space<vmem>>, vector<1x32x128xbf16>
    %172 = vector.shape_cast %171 : vector<1x32x128xbf16> to vector<32x128xbf16>
    %173 = vector.extract_strided_slice %172 {offsets = [0, 0], sizes = [32, 64], strides = [1, 1]} : vector<32x128xbf16> to vector<32x64xbf16>
    %c14 = arith.constant 14 : index
    %c0_102 = arith.constant 0 : index
    %c0_103 = arith.constant 0 : index
    %174 = vector.load %arg3[%c14, %c0_102, %c0_103] : memref<17x32x128xbf16, #tpu.memory_space<vmem>>, vector<1x32x128xbf16>
    %175 = vector.shape_cast %174 : vector<1x32x128xbf16> to vector<32x128xbf16>
    %176 = vector.extract_strided_slice %175 {offsets = [0, 0], sizes = [32, 64], strides = [1, 1]} : vector<32x128xbf16> to vector<32x64xbf16>
    %c12_104 = arith.constant 12 : index
    %c0_105 = arith.constant 0 : index
    %c0_106 = arith.constant 0 : index
    %177 = vector.load %arg4[%c12_104, %c0_105, %c0_106] : memref<15x1x128xf32, #tpu.memory_space<vmem>>, vector<1x1x128xf32>
    %178 = vector.shape_cast %177 : vector<1x1x128xf32> to vector<1x128xf32>
    %179 = vector.extract_strided_slice %178 {offsets = [0, 0], sizes = [1, 32], strides = [1, 1]} : vector<1x128xf32> to vector<1x32xf32>
    %cst_107 = arith.constant dense<0.000000e+00> : vector<64x64xf32>
    %180 = tpu.matmul %114, %173, %cst_107 {dimension_numbers = #tpu.dot_dimension_numbers<[1], [0], [0], [1], [0, 0, 1, 1], [], []>} : vector<64x32xbf16>, vector<32x64xbf16>, vector<64x64xf32> -> vector<64x64xf32>
    %cst_108 = arith.constant dense<0.000000e+00> : vector<64x64xf32>
    %181 = tpu.matmul %170, %176, %cst_108 {dimension_numbers = #tpu.dot_dimension_numbers<[1], [0], [0], [1], [0, 0, 1, 1], [], []>} : vector<64x32xbf16>, vector<32x64xbf16>, vector<64x64xf32> -> vector<64x64xf32>
    %182 = arith.addf %180, %181 : vector<64x64xf32>
    %183 = vector.extract_strided_slice %182 {offsets = [0, 0], sizes = [64, 32], strides = [1, 1]} : vector<64x64xf32> to vector<64x32xf32>
    %184 = vector.extract_strided_slice %182 {offsets = [0, 32], sizes = [64, 32], strides = [1, 1]} : vector<64x64xf32> to vector<64x32xf32>
    %185 = arith.truncf %183 : vector<64x32xf32> to vector<64x32xbf16>
    %cst_109 = arith.constant dense<0.000000e+00> : vector<64x32xf32>
    %186 = tpu.matmul %1, %185, %cst_109 {dimension_numbers = #tpu.dot_dimension_numbers<[1], [0], [0], [1], [0, 0, 1, 1], [], []>} : vector<64x64xbf16>, vector<64x32xbf16>, vector<64x32xf32> -> vector<64x32xf32>
    %187 = vector.broadcast %179 : vector<1x32xf32> to vector<64x32xf32>
    %188 = arith.addf %186, %187 : vector<64x32xf32>
    %189 = arith.addf %188, %184 : vector<64x32xf32>
    %190 = arith.truncf %189 : vector<64x32xf32> to vector<64x32xbf16>
    %c15 = arith.constant 15 : index
    %c0_110 = arith.constant 0 : index
    %c0_111 = arith.constant 0 : index
    %191 = vector.load %arg3[%c15, %c0_110, %c0_111] : memref<17x32x128xbf16, #tpu.memory_space<vmem>>, vector<1x32x128xbf16>
    %192 = vector.shape_cast %191 : vector<1x32x128xbf16> to vector<32x128xbf16>
    %193 = vector.extract_strided_slice %192 {offsets = [0, 0], sizes = [32, 8], strides = [1, 1]} : vector<32x128xbf16> to vector<32x8xbf16>
    %c13_112 = arith.constant 13 : index
    %c0_113 = arith.constant 0 : index
    %c0_114 = arith.constant 0 : index
    %194 = vector.load %arg4[%c13_112, %c0_113, %c0_114] : memref<15x1x128xf32, #tpu.memory_space<vmem>>, vector<1x1x128xf32>
    %195 = vector.shape_cast %194 : vector<1x1x128xf32> to vector<1x128xf32>
    %196 = vector.extract_strided_slice %195 {offsets = [0, 0], sizes = [1, 8], strides = [1, 1]} : vector<1x128xf32> to vector<1x8xf32>
    %cst_115 = arith.constant dense<0.000000e+00> : vector<64x8xf32>
    %197 = tpu.matmul %190, %193, %cst_115 {dimension_numbers = #tpu.dot_dimension_numbers<[1], [0], [0], [1], [0, 0, 1, 1], [], []>} : vector<64x32xbf16>, vector<32x8xbf16>, vector<64x8xf32> -> vector<64x8xf32>
    %198 = arith.truncf %197 : vector<64x8xf32> to vector<64x8xbf16>
    %cst_116 = arith.constant dense<0.000000e+00> : vector<64x8xf32>
    %199 = tpu.matmul %0, %198, %cst_116 {dimension_numbers = #tpu.dot_dimension_numbers<[1], [0], [0], [1], [0, 0, 1, 1], [], []>} : vector<64x64xbf16>, vector<64x8xbf16>, vector<64x8xf32> -> vector<64x8xf32>
    %200 = vector.broadcast %196 : vector<1x8xf32> to vector<64x8xf32>
    %201 = arith.addf %199, %200 : vector<64x8xf32>
    %202 = arith.truncf %201 : vector<64x8xf32> to vector<64x8xbf16>
    %c16 = arith.constant 16 : index
    %c0_117 = arith.constant 0 : index
    %c0_118 = arith.constant 0 : index
    %203 = vector.load %arg3[%c16, %c0_117, %c0_118] : memref<17x32x128xbf16, #tpu.memory_space<vmem>>, vector<1x32x128xbf16>
    %204 = vector.shape_cast %203 : vector<1x32x128xbf16> to vector<32x128xbf16>
    %205 = vector.extract_strided_slice %204 {offsets = [0, 0], sizes = [8, 8], strides = [1, 1]} : vector<32x128xbf16> to vector<8x8xbf16>
    %c14_119 = arith.constant 14 : index
    %c0_120 = arith.constant 0 : index
    %c0_121 = arith.constant 0 : index
    %206 = vector.load %arg4[%c14_119, %c0_120, %c0_121] : memref<15x1x128xf32, #tpu.memory_space<vmem>>, vector<1x1x128xf32>
    %207 = vector.shape_cast %206 : vector<1x1x128xf32> to vector<1x128xf32>
    %208 = vector.extract_strided_slice %207 {offsets = [0, 0], sizes = [1, 8], strides = [1, 1]} : vector<1x128xf32> to vector<1x8xf32>
    %cst_122 = arith.constant dense<0.000000e+00> : vector<64x8xf32>
    %209 = tpu.matmul %202, %205, %cst_122 {dimension_numbers = #tpu.dot_dimension_numbers<[1], [0], [0], [1], [0, 0, 1, 1], [], []>} : vector<64x8xbf16>, vector<8x8xbf16>, vector<64x8xf32> -> vector<64x8xf32>
    %210 = arith.truncf %209 : vector<64x8xf32> to vector<64x8xbf16>
    %cst_123 = arith.constant dense<0.000000e+00> : vector<64x8xf32>
    %211 = tpu.matmul %0, %210, %cst_123 {dimension_numbers = #tpu.dot_dimension_numbers<[1], [0], [0], [1], [0, 0, 1, 1], [], []>} : vector<64x64xbf16>, vector<64x8xbf16>, vector<64x8xf32> -> vector<64x8xf32>
    %212 = vector.broadcast %208 : vector<1x8xf32> to vector<64x8xf32>
    %213 = arith.addf %211, %212 : vector<64x8xf32>
    %c0_124 = arith.constant 0 : index
    %c0_125 = arith.constant 0 : index
    %214 = vector.load %arg5[%c0_124, %c0_125] : memref<64x8xf32, #tpu.memory_space<vmem>>, vector<64x8xf32>
    tpu.vector_store %arg5[%c0_124, %c0_125], %213 {strides = array<i32>} : memref<64x8xf32, #tpu.memory_space<vmem>>, vector<64x8xf32>,
    return
  }
}

</mosaic_0001>

<llo_original>
// kernel: tpu_custom_call.1
$region0: #{tpu_custom_call.1}
  #allocation0 [shape = 'u32[]', space=smem, size = 0x4, offset = 0x4, fixed_abs, tag = 'smem constant byte address 0x4 - core index']
  #allocation1 [shape = 'u32[72,128]{1,0:T(1,128)}', space=vmem, size = 0x9000, scoped, tag = 'internal scratch']
  %s0 = inlined_call_operand.vmem [shape: bf16[64,64], index: 0, kind: input, shape index: {}]
  %s1 = inlined_call_operand.hbm [shape: bf16[64,64], index: 1, kind: input, shape index: {}]
  %s2 = inlined_call_operand.vmem [shape: bf16[64,16], index: 2, kind: input, shape index: {}]
  %s3 = inlined_call_operand.hbm [shape: bf16[17,32,128], index: 3, kind: input, shape index: {}]
  %s4 = inlined_call_operand.hbm [shape: f32[15,1,128], index: 4, kind: input, shape index: {}]
  %s5 = inlined_call_operand.vmem [shape: f32[64,8], index: 5, kind: output, shape index: {}]
  %s6 = sld [smem:[#allocation0]]
  $region42: #{tpu_custom_call.1} parent=0
    _
  %s8 = ssub.s32 1, %s6
  %s9 = scalar_select 0, %s8, %s6
  $region1: #{tpu_custom_call.1} parent=0
    #allocation2 [shape = 'u8[16384]{0}', space=vmem, size = 0x4000, scoped, tag = 'input window, operand 1, single buffered']
    #allocation3 [shape = 's32[1]{0}', space=sflag, size = 0x4, scoped, tag = 'scoped memory for tpu_custom_call.1']
    #allocation4 [shape = 'u8[139264]{0}', space=vmem, size = 0x22000, scoped, tag = 'input window, operand 3, single buffered']
    #allocation5 [shape = 's32[1]{0}', space=sflag, size = 0x4, scoped, tag = 'scoped memory for tpu_custom_call.1']
    #allocation6 [shape = 'u8[7680]{0}', space=vmem, size = 0x2000, scoped, tag = 'input window, operand 4, single buffered']
    %10 = vsyncpa [#allocation3], 0
    %11 = vsyncpa [#allocation5], 0
    // Predicated region
    $region2: #{tpu_custom_call.1} parent=1 // pred_check
      _
    $region3: #{tpu_custom_call.1} parent=1 // pred_check_branch
      %13 = sbr.rel (0) target = $region5
    $region4: #{tpu_custom_call.1} parent=1 // pred_region
      _
    $region5: #{tpu_custom_call.1} parent=1 // pred_fallthru
      _
    // Predicated region
    $region6: #{tpu_custom_call.1} parent=1 // pred_check
      _
    $region7: #{tpu_custom_call.1} parent=1 // pred_check_branch
      %15 = sbr.rel (0) target = $region9
    $region8: #{tpu_custom_call.1} parent=1 // pred_region
      %17 = vsyncadd [#allocation3], 0
      %s18 = sshll.u32 %s1, 4
      %s19 = int_to_ptr.hbm [resolvable:$true] %s18
      %s20 = sshll.u32 [#allocation2], 4
      %s21 = int_to_ptr.vmem [resolvable:$true] %s20
      %26 = dma.hbm_to_vmem [thread:$0]  %s19, 512, %s21, [#allocation3], 64, 64, 4
    $region9: #{tpu_custom_call.1} parent=1 // pred_fallthru
      _
    // Predicated region
    $region10: #{tpu_custom_call.1} parent=1 // pred_check
      _
    $region11: #{tpu_custom_call.1} parent=1 // pred_check_branch
      %28 = sbr.rel (0) target = $region13
    $region12: #{tpu_custom_call.1} parent=1 // pred_region
      _
    $region13: #{tpu_custom_call.1} parent=1 // pred_fallthru
      _
    // Predicated region
    $region14: #{tpu_custom_call.1} parent=1 // pred_check
      _
    $region15: #{tpu_custom_call.1} parent=1 // pred_check_branch
      %30 = sbr.rel (0) target = $region17
    $region16: #{tpu_custom_call.1} parent=1 // pred_region
      %32 = vsyncadd [#allocation5], 0
      %s33 = sshll.u32 %s3, 4
      %s34 = int_to_ptr.hbm [resolvable:$true] %s33
      %s35 = sshll.u32 [#allocation4], 4
      %s36 = int_to_ptr.vmem [resolvable:$true] %s35
      %41 = dma.hbm_to_vmem [thread:$0]  %s34, 4352, %s36, [#allocation5], 64, 64, 4
    $region17: #{tpu_custom_call.1} parent=1 // pred_fallthru
      _
    // Predicated region
    $region18: #{tpu_custom_call.1} parent=1 // pred_check
      _
    $region19: #{tpu_custom_call.1} parent=1 // pred_check_branch
      %43 = sbr.rel (0) target = $region21
    $region20: #{tpu_custom_call.1} parent=1 // pred_region
      %45 = vsyncadd [#allocation5], 0
      %s46 = sshll.u32 %s4, 4
      %s47 = int_to_ptr.hbm [resolvable:$true] %s46
      %s48 = sshll.u32 [#allocation6], 4
      %s49 = int_to_ptr.vmem [resolvable:$true] %s48
      %54 = dma.hbm_to_vmem [thread:$0]  %s47, 240, %s49, [#allocation5], 16, 16, 1
    $region21: #{tpu_custom_call.1} parent=1 // pred_fallthru
      _
    // Predicated region
    $region22: #{tpu_custom_call.1} parent=1 // pred_check
      _
    $region23: #{tpu_custom_call.1} parent=1 // pred_check_branch
      %56 = sbr.rel (0) target = $region25
    $region24: #{tpu_custom_call.1} parent=1 // pred_region
      %58 = dma.done [#allocation3], 512
    $region25: #{tpu_custom_call.1} parent=1 // pred_fallthru
      _
    // Predicated region
    $region26: #{tpu_custom_call.1} parent=1 // pred_check
      _
    $region27: #{tpu_custom_call.1} parent=1 // pred_check_branch
      %60 = sbr.rel (0) target = $region29
    $region28: #{tpu_custom_call.1} parent=1 // pred_region
      %62 = dma.done [#allocation5], 4352
    $region29: #{tpu_custom_call.1} parent=1 // pred_fallthru
      _
    // Predicated region
    $region30: #{tpu_custom_call.1} parent=1 // pred_check
      _
    $region31: #{tpu_custom_call.1} parent=1 // pred_check_branch
      %64 = sbr.rel (0) target = $region33
    $region32: #{tpu_custom_call.1} parent=1 // pred_region
      %66 = dma.done [#allocation5], 240
    $region33: #{tpu_custom_call.1} parent=1 // pred_fallthru
      _
    %v68 = vld [vmem:[%s0] sm:$0xf]
    %v69 = vld [vmem:[%s0 + $0x4] sm:$0xf]
    %v70 = vld [vmem:[%s0 + $0x8] sm:$0xf]
    %v71 = vld [vmem:[%s0 + $0xc] sm:$0xf]
    %v72 = vld [vmem:[%s0 + $0x10] sm:$0xf]
    %v73 = vld [vmem:[%s0 + $0x14] sm:$0xf]
    %v74 = vld [vmem:[%s0 + $0x18] sm:$0xf]
    %v75 = vld [vmem:[%s0 + $0x1c] sm:$0xf]
    %v76 = vld [vmem:[#allocation2] sm:$0xf]
    %v77 = vld [vmem:[#allocation2 + $0x4] sm:$0xf]
    %v78 = vld [vmem:[#allocation2 + $0x8] sm:$0xf]
    %v79 = vld [vmem:[#allocation2 + $0xc] sm:$0xf]
    %v80 = vld [vmem:[#allocation2 + $0x10] sm:$0xf]
    %v81 = vld [vmem:[#allocation2 + $0x14] sm:$0xf]
    %v82 = vld [vmem:[#allocation2 + $0x18] sm:$0xf]
    %v83 = vld [vmem:[#allocation2 + $0x1c] sm:$0xf]
    %v84 = vld [vmem:[%s2] sm:$0xf]
    %v85 = vld [vmem:[%s2 + $0x4] sm:$0xf]
    %v86 = vld [vmem:[%s2 + $0x8] sm:$0xf]
    %v87 = vld [vmem:[%s2 + $0xc] sm:$0xf]
    %v88 = vld [vmem:[%s2 + $0x10] sm:$0xf]
    %v89 = vld [vmem:[%s2 + $0x14] sm:$0xf]
    %v90 = vld [vmem:[%s2 + $0x18] sm:$0xf]
    %v91 = vld [vmem:[%s2 + $0x1c] sm:$0xf]
    %v92 = vld [vmem:[#allocation4] sm:$0xf]
    %v93 = vld [vmem:[#allocation4 + $0x4] sm:$0xf]
    %v94 = vld [vmem:[#allocation6] sm:$0x1]
    %v103 = vunpack.c.l.b16 %v84
    %v104 = vunpack.c.l.b16 %v85
    %v105 = vunpack.c.l.b16 %v86
    %v106 = vunpack.c.l.b16 %v87
    %v107 = vunpack.c.l.b16 %v88
    %v108 = vunpack.c.l.b16 %v89
    %v109 = vunpack.c.l.b16 %v90
    %v110 = vunpack.c.l.b16 %v91
    %v111 = vpack.c.b16 %v104, %v103
    %v112 = vpack.c.b16 %v106, %v105
    %v113 = vpack.c.b16 %v108, %v107
    %v114 = vpack.c.b16 %v110, %v109
    %v117 = vunpack.c.l.b16 %v92
    %v118 = vunpack.c.l.b16 %v93
    %v119 = vpack.c.b16 %v118, %v117
    %vm121 = vcmask 130048
    %v123 = vsel %vm121, %v111, 0
    %v126 = vsel %vm121, %v112, 0
    %v129 = vsel %vm121, %v113, 0
    %v132 = vsel %vm121, %v114, 0
    %134 = vmatpush.bf16.msra.mxu0 0
    %135 = vmatpush.bf16.msra.mxu0 0
    %136 = vmatpush.bf16.msra.mxu0 0
    %137 = vmatpush.bf16.msra.mxu0 0
    %138 = vmatpush.bf16.msra.mxu0 0
    %139 = vmatpush.bf16.msra.mxu0 0
    %140 = vmatpush.bf16.msra.mxu0 0
    %141 = vmatpush.bf16.msra.mxu0 %v119
    %142 = vmatmul.bf16.gmra.mxu0 %v123
    %v143 = vpop.f32.mrf.mxu0
    %v144 = vadd.f32 0.0, %v143
    %v145 = vpop.f32.mrf.mxu0
    %v146 = vadd.f32 0.0, %v145
    %147 = vmatmul.bf16.gmra.mxu0 %v126
    %v148 = vpop.f32.mrf.mxu0
    %v149 = vadd.f32 0.0, %v148
    %v150 = vpop.f32.mrf.mxu0
    %v151 = vadd.f32 0.0, %v150
    %152 = vmatmul.bf16.gmra.mxu0 %v129
    %v153 = vpop.f32.mrf.mxu0
    %v154 = vadd.f32 0.0, %v153
    %v155 = vpop.f32.mrf.mxu0
    %v156 = vadd.f32 0.0, %v155
    %157 = vmatmul.bf16.gmra.mxu0 %v132
    %v158 = vpop.f32.mrf.mxu0
    %v159 = vadd.f32 0.0, %v158
    %v160 = vpop.f32.mrf.mxu0
    %v161 = vadd.f32 0.0, %v160
    %162 = vdwg.mxu0
    %v163 = vpack.c.bf16 %v146, %v144
    %v164 = vpack.c.bf16 %v151, %v149
    %v165 = vpack.c.bf16 %v156, %v154
    %v166 = vpack.c.bf16 %v161, %v159
    %v168 = vperm.slane %v94, 0
    %v178 = vunpack.c.l.b16 %v68
    %v179 = vunpack.c.l.b16 %v69
    %v180 = vunpack.c.l.b16 %v70
    %v181 = vunpack.c.l.b16 %v71
    %v182 = vunpack.c.l.b16 %v72
    %v183 = vunpack.c.l.b16 %v73
    %v184 = vunpack.c.l.b16 %v74
    %v185 = vunpack.c.l.b16 %v75
    %v186 = vpack.c.b16 %v179, %v178
    %v187 = vpack.c.b16 %v181, %v180
    %v188 = vpack.c.b16 %v183, %v182
    %v189 = vpack.c.b16 %v185, %v184
    %vm190 = vcmask 523264
    %v192 = vsel %vm190, %v186, 0
    %v195 = vsel %vm190, %v187, 0
    %v198 = vsel %vm190, %v188, 0
    %v201 = vsel %vm190, %v189, 0
    %203 = vmatpush.bf16.msra.mxu0 0
    %204 = vmatpush.bf16.msra.mxu0 0
    %205 = vmatpush.bf16.msra.mxu0 0
    %206 = vmatpush.bf16.msra.mxu0 0
    %207 = vmatpush.bf16.msra.mxu0 %v166
    %208 = vmatpush.bf16.msra.mxu0 %v165
    %209 = vmatpush.bf16.msra.mxu0 %v164
    %210 = vmatpush.bf16.msra.mxu0 %v163
    %211 = vmatmul.bf16.gmra.mxu0 %v192
    %v212 = vpop.f32.mrf.mxu0
    %v213 = vadd.f32 %v168, %v212
    %v214 = vpop.f32.mrf.mxu0
    %v215 = vadd.f32 %v168, %v214
    %216 = vmatmul.bf16.gmra.mxu0 %v195
    %v217 = vpop.f32.mrf.mxu0
    %v218 = vadd.f32 %v168, %v217
    %v219 = vpop.f32.mrf.mxu0
    %v220 = vadd.f32 %v168, %v219
    %221 = vmatmul.bf16.gmra.mxu0 %v198
    %v222 = vpop.f32.mrf.mxu0
    %v223 = vadd.f32 %v168, %v222
    %v224 = vpop.f32.mrf.mxu0
    %v225 = vadd.f32 %v168, %v224
    %226 = vmatmul.bf16.gmra.mxu0 %v201
    %v227 = vpop.f32.mrf.mxu0
    %v228 = vadd.f32 %v168, %v227
    %v229 = vpop.f32.mrf.mxu0
    %v230 = vadd.f32 %v168, %v229
    %231 = vdwg.mxu0
    %v232 = vpack.c.bf16 %v215, %v213
    %v233 = vpack.c.bf16 %v220, %v218
    %v234 = vpack.c.bf16 %v225, %v223
    %v235 = vpack.c.bf16 %v230, %v228
    %s236 = scalar_lea.vmem [#allocation4], 16
    %v237 = vld [vmem:[%s236] sm:$0xf]
    %v238 = vld [vmem:[%s236 + $0x4] sm:$0xf]
    %v239 = vld [vmem:[%s236 + $0x8] sm:$0xf]
    %v240 = vld [vmem:[%s236 + $0xc] sm:$0xf]
    %s241 = scalar_lea.vmem [#allocation6], 1
    %v242 = vld [vmem:[%s241] sm:$0x1]
    %v247 = vunpack.c.l.b16 %v237
    %v248 = vunpack.c.l.b16 %v238
    %v249 = vunpack.c.l.b16 %v239
    %v250 = vunpack.c.l.b16 %v240
    %v251 = vpack.c.b16 %v248, %v247
    %v252 = vpack.c.b16 %v250, %v249
    %vm255 = vcmask 261120
    %v257 = vsel %vm255, %v232, 0
    %v260 = vsel %vm255, %v233, 0
    %v263 = vsel %vm255, %v234, 0
    %v266 = vsel %vm255, %v235, 0
    %268 = vmatpush.bf16.msra.mxu0 0
    %269 = vmatpush.bf16.msra.mxu0 0
    %270 = vmatpush.bf16.msra.mxu0 0
    %271 = vmatpush.bf16.msra.mxu0 0
    %272 = vmatpush.bf16.msra.mxu0 0
    %273 = vmatpush.bf16.msra.mxu0 0
    %274 = vmatpush.bf16.msra.mxu0 %v252
    %275 = vmatpush.bf16.msra.mxu0 %v251
    %276 = vmatmul.bf16.gmra.mxu0 %v257
    %v277 = vpop.f32.mrf.mxu0
    %v278 = vadd.f32 0.0, %v277
    %v279 = vpop.f32.mrf.mxu0
    %v280 = vadd.f32 0.0, %v279
    %281 = vmatmul.bf16.gmra.mxu0 %v260
    %v282 = vpop.f32.mrf.mxu0
    %v283 = vadd.f32 0.0, %v282
    %v284 = vpop.f32.mrf.mxu0
    %v285 = vadd.f32 0.0, %v284
    %286 = vmatmul.bf16.gmra.mxu0 %v263
    %v287 = vpop.f32.mrf.mxu0
    %v288 = vadd.f32 0.0, %v287
    %v289 = vpop.f32.mrf.mxu0
    %v290 = vadd.f32 0.0, %v289
    %291 = vmatmul.bf16.gmra.mxu0 %v266
    %v292 = vpop.f32.mrf.mxu0
    %v293 = vadd.f32 0.0, %v292
    %v294 = vpop.f32.mrf.mxu0
    %v295 = vadd.f32 0.0, %v294
    %296 = vdwg.mxu0
    %v297 = vpack.c.bf16 %v280, %v278
    %v298 = vpack.c.bf16 %v285, %v283
    %v299 = vpack.c.bf16 %v290, %v288
    %v300 = vpack.c.bf16 %v295, %v293
    %v302 = vperm.slane %v242, 0
    %304 = vmatpush.bf16.msra.mxu0 0
    %305 = vmatpush.bf16.msra.mxu0 0
    %306 = vmatpush.bf16.msra.mxu0 0
    %307 = vmatpush.bf16.msra.mxu0 0
    %308 = vmatpush.bf16.msra.mxu0 %v300
    %309 = vmatpush.bf16.msra.mxu0 %v299
    %310 = vmatpush.bf16.msra.mxu0 %v298
    %311 = vmatpush.bf16.msra.mxu0 %v297
    %312 = vmatmul.bf16.gmra.mxu0 %v192
    %v313 = vpop.f32.mrf.mxu0
    %v314 = vadd.f32 %v302, %v313
    %v315 = vpop.f32.mrf.mxu0
    %v316 = vadd.f32 %v302, %v315
    %317 = vmatmul.bf16.gmra.mxu0 %v195
    %v318 = vpop.f32.mrf.mxu0
    %v319 = vadd.f32 %v302, %v318
    %v320 = vpop.f32.mrf.mxu0
    %v321 = vadd.f32 %v302, %v320
    %322 = vmatmul.bf16.gmra.mxu0 %v198
    %v323 = vpop.f32.mrf.mxu0
    %v324 = vadd.f32 %v302, %v323
    %v325 = vpop.f32.mrf.mxu0
    %v326 = vadd.f32 %v302, %v325
    %327 = vmatmul.bf16.gmra.mxu0 %v201
    %v328 = vpop.f32.mrf.mxu0
    %v329 = vadd.f32 %v302, %v328
    %v330 = vpop.f32.mrf.mxu0
    %v331 = vadd.f32 %v302, %v330
    %332 = vdwg.mxu0
    %v333 = vmax.f32 %v314, 0.0
    %v334 = vmax.f32 %v316, 0.0
    %v335 = vmax.f32 %v319, 0.0
    %v336 = vmax.f32 %v321, 0.0
    %v337 = vmax.f32 %v324, 0.0
    %v338 = vmax.f32 %v326, 0.0
    %v339 = vmax.f32 %v329, 0.0
    %v340 = vmax.f32 %v331, 0.0
    %v341 = vpack.c.bf16 %v334, %v333
    %v342 = vpack.c.bf16 %v336, %v335
    %v343 = vpack.c.bf16 %v338, %v337
    %v344 = vpack.c.bf16 %v340, %v339
    %s345 = scalar_lea.vmem [#allocation4], 32
    %v346 = vld [vmem:[%s345] sm:$0xf]
    %v347 = vld [vmem:[%s345 + $0x4] sm:$0xf]
    %v348 = vld [vmem:[%s345 + $0x8] sm:$0xf]
    %v349 = vld [vmem:[%s345 + $0xc] sm:$0xf]
    %s350 = scalar_lea.vmem [#allocation6], 2
    %v351 = vld [vmem:[%s350] sm:$0x1]
    %v356 = vunpack.c.l.b16 %v346
    %v357 = vunpack.c.l.b16 %v347
    %v358 = vunpack.c.l.b16 %v348
    %v359 = vunpack.c.l.b16 %v349
    %v360 = vpack.c.b16 %v357, %v356
    %v361 = vpack.c.b16 %v359, %v358
    %v365 = vsel %vm255, %v341, 0
    %v368 = vsel %vm255, %v342, 0
    %v371 = vsel %vm255, %v343, 0
    %v374 = vsel %vm255, %v344, 0
    %376 = vmatpush.bf16.msra.mxu0 0
    %377 = vmatpush.bf16.msra.mxu0 0
    %378 = vmatpush.bf16.msra.mxu0 0
    %379 = vmatpush.bf16.msra.mxu0 0
    %380 = vmatpush.bf16.msra.mxu0 0
    %381 = vmatpush.bf16.msra.mxu0 0
    %382 = vmatpush.bf16.msra.mxu0 %v361
    %383 = vmatpush.bf16.msra.mxu0 %v360
    %384 = vmatmul.bf16.gmra.mxu0 %v365
    %v385 = vpop.f32.mrf.mxu0
    %v386 = vadd.f32 0.0, %v385
    %v387 = vpop.f32.mrf.mxu0
    %v388 = vadd.f32 0.0, %v387
    %389 = vmatmul.bf16.gmra.mxu0 %v368
    %v390 = vpop.f32.mrf.mxu0
    %v391 = vadd.f32 0.0, %v390
    %v392 = vpop.f32.mrf.mxu0
    %v393 = vadd.f32 0.0, %v392
    %394 = vmatmul.bf16.gmra.mxu0 %v371
    %v395 = vpop.f32.mrf.mxu0
    %v396 = vadd.f32 0.0, %v395
    %v397 = vpop.f32.mrf.mxu0
    %v398 = vadd.f32 0.0, %v397
    %399 = vmatmul.bf16.gmra.mxu0 %v374
    %v400 = vpop.f32.mrf.mxu0
    %v401 = vadd.f32 0.0, %v400
    %v402 = vpop.f32.mrf.mxu0
    %v403 = vadd.f32 0.0, %v402
    %404 = vdwg.mxu0
    %v405 = vpack.c.bf16 %v388, %v386
    %v406 = vpack.c.bf16 %v393, %v391
    %v407 = vpack.c.bf16 %v398, %v396
    %v408 = vpack.c.bf16 %v403, %v401
    %v410 = vperm.slane %v351, 0
    %412 = vmatpush.bf16.msra.mxu0 0
    %413 = vmatpush.bf16.msra.mxu0 0
    %414 = vmatpush.bf16.msra.mxu0 0
    %415 = vmatpush.bf16.msra.mxu0 0
    %416 = vmatpush.bf16.msra.mxu0 %v408
    %417 = vmatpush.bf16.msra.mxu0 %v407
    %418 = vmatpush.bf16.msra.mxu0 %v406
    %419 = vmatpush.bf16.msra.mxu0 %v405
    %420 = vmatmul.bf16.gmra.mxu0 %v192
    %v421 = vpop.f32.mrf.mxu0
    %v422 = vadd.f32 %v410, %v421
    %v423 = vpop.f32.mrf.mxu0
    %v424 = vadd.f32 %v410, %v423
    %425 = vmatmul.bf16.gmra.mxu0 %v195
    %v426 = vpop.f32.mrf.mxu0
    %v427 = vadd.f32 %v410, %v426
    %v428 = vpop.f32.mrf.mxu0
    %v429 = vadd.f32 %v410, %v428
    %430 = vmatmul.bf16.gmra.mxu0 %v198
    %v431 = vpop.f32.mrf.mxu0
    %v432 = vadd.f32 %v410, %v431
    %v433 = vpop.f32.mrf.mxu0
    %v434 = vadd.f32 %v410, %v433
    %435 = vmatmul.bf16.gmra.mxu0 %v201
    %v436 = vpop.f32.mrf.mxu0
    %v437 = vadd.f32 %v410, %v436
    %v438 = vpop.f32.mrf.mxu0
    %v439 = vadd.f32 %v410, %v438
    %440 = vdwg.mxu0
    %v441 = vmax.f32 %v422, 0.0
    %v442 = vmax.f32 %v424, 0.0
    %v443 = vmax.f32 %v427, 0.0
    %v444 = vmax.f32 %v429, 0.0
    %v445 = vmax.f32 %v432, 0.0
    %v446 = vmax.f32 %v434, 0.0
    %v447 = vmax.f32 %v437, 0.0
    %v448 = vmax.f32 %v439, 0.0
    %v449 = vpack.c.bf16 %v442, %v441
    %v450 = vpack.c.bf16 %v444, %v443
    %v451 = vpack.c.bf16 %v446, %v445
    %v452 = vpack.c.bf16 %v448, %v447
    %s453 = scalar_lea.vmem [#allocation4], 48
    %v454 = vld [vmem:[%s453] sm:$0xf]
    %v455 = vld [vmem:[%s453 + $0x4] sm:$0xf]
    %v456 = vld [vmem:[%s453 + $0x8] sm:$0xf]
    %v457 = vld [vmem:[%s453 + $0xc] sm:$0xf]
    %s458 = scalar_lea.vmem [#allocation6], 3
    %v459 = vld [vmem:[%s458] sm:$0x1]
    %v464 = vunpack.c.l.b16 %v454
    %v465 = vunpack.c.l.b16 %v455
    %v466 = vunpack.c.l.b16 %v456
    %v467 = vunpack.c.l.b16 %v457
    %v468 = vpack.c.b16 %v465, %v464
    %v469 = vpack.c.b16 %v467, %v466
    %v473 = vsel %vm255, %v449, 0
    %v476 = vsel %vm255, %v450, 0
    %v479 = vsel %vm255, %v451, 0
    %v482 = vsel %vm255, %v452, 0
    %484 = vmatpush.bf16.msra.mxu0 0
    %485 = vmatpush.bf16.msra.mxu0 0
    %486 = vmatpush.bf16.msra.mxu0 0
    %487 = vmatpush.bf16.msra.mxu0 0
    %488 = vmatpush.bf16.msra.mxu0 0
    %489 = vmatpush.bf16.msra.mxu0 0
    %490 = vmatpush.bf16.msra.mxu0 %v469
    %491 = vmatpush.bf16.msra.mxu0 %v468
    %492 = vmatmul.bf16.gmra.mxu0 %v473
    %v493 = vpop.f32.mrf.mxu0
    %v494 = vadd.f32 0.0, %v493
    %v495 = vpop.f32.mrf.mxu0
    %v496 = vadd.f32 0.0, %v495
    %497 = vmatmul.bf16.gmra.mxu0 %v476
    %v498 = vpop.f32.mrf.mxu0
    %v499 = vadd.f32 0.0, %v498
    %v500 = vpop.f32.mrf.mxu0
    %v501 = vadd.f32 0.0, %v500
    %502 = vmatmul.bf16.gmra.mxu0 %v479
    %v503 = vpop.f32.mrf.mxu0
    %v504 = vadd.f32 0.0, %v503
    %v505 = vpop.f32.mrf.mxu0
    %v506 = vadd.f32 0.0, %v505
    %507 = vmatmul.bf16.gmra.mxu0 %v482
    %v508 = vpop.f32.mrf.mxu0
    %v509 = vadd.f32 0.0, %v508
    %v510 = vpop.f32.mrf.mxu0
    %v511 = vadd.f32 0.0, %v510
    %512 = vdwg.mxu0
    %v513 = vpack.c.bf16 %v496, %v494
    %v514 = vpack.c.bf16 %v501, %v499
    %v515 = vpack.c.bf16 %v506, %v504
    %v516 = vpack.c.bf16 %v511, %v509
    %v518 = vperm.slane %v459, 0
    %520 = vmatpush.bf16.msra.mxu0 0
    %521 = vmatpush.bf16.msra.mxu0 0
    %522 = vmatpush.bf16.msra.mxu0 0
    %523 = vmatpush.bf16.msra.mxu0 0
    %524 = vmatpush.bf16.msra.mxu0 %v516
    %525 = vmatpush.bf16.msra.mxu0 %v515
    %526 = vmatpush.bf16.msra.mxu0 %v514
    %527 = vmatpush.bf16.msra.mxu0 %v513
    %528 = vmatmul.bf16.gmra.mxu0 %v192
    %v529 = vpop.f32.mrf.mxu0
    %v530 = vadd.f32 %v518, %v529
    %v531 = vpop.f32.mrf.mxu0
    %v532 = vadd.f32 %v518, %v531
    %533 = vmatmul.bf16.gmra.mxu0 %v195
    %v534 = vpop.f32.mrf.mxu0
    %v535 = vadd.f32 %v518, %v534
    %v536 = vpop.f32.mrf.mxu0
    %v537 = vadd.f32 %v518, %v536
    %538 = vmatmul.bf16.gmra.mxu0 %v198
    %v539 = vpop.f32.mrf.mxu0
    %v540 = vadd.f32 %v518, %v539
    %v541 = vpop.f32.mrf.mxu0
    %v542 = vadd.f32 %v518, %v541
    %543 = vmatmul.bf16.gmra.mxu0 %v201
    %v544 = vpop.f32.mrf.mxu0
    %v545 = vadd.f32 %v518, %v544
    %v546 = vpop.f32.mrf.mxu0
    %v547 = vadd.f32 %v518, %v546
    %548 = vdwg.mxu0
    %v549 = vmax.f32 %v530, 0.0
    %v550 = vmax.f32 %v532, 0.0
    %v551 = vmax.f32 %v535, 0.0
    %v552 = vmax.f32 %v537, 0.0
    %v553 = vmax.f32 %v540, 0.0
    %v554 = vmax.f32 %v542, 0.0
    %v555 = vmax.f32 %v545, 0.0
    %v556 = vmax.f32 %v547, 0.0
    %v557 = vpack.c.bf16 %v550, %v549
    %v558 = vpack.c.bf16 %v552, %v551
    %v559 = vpack.c.bf16 %v554, %v553
    %v560 = vpack.c.bf16 %v556, %v555
    %s561 = scalar_lea.vmem [#allocation4], 64
    %v562 = vld [vmem:[%s561] sm:$0xf]
    %v563 = vld [vmem:[%s561 + $0x4] sm:$0xf]
    %v564 = vld [vmem:[%s561 + $0x8] sm:$0xf]
    %v565 = vld [vmem:[%s561 + $0xc] sm:$0xf]
    %s566 = scalar_lea.vmem [#allocation6], 4
    %v567 = vld [vmem:[%s566] sm:$0x1]
    %v572 = vunpack.c.l.b16 %v562
    %v573 = vunpack.c.l.b16 %v563
    %v574 = vunpack.c.l.b16 %v564
    %v575 = vunpack.c.l.b16 %v565
    %v576 = vpack.c.b16 %v573, %v572
    %v577 = vpack.c.b16 %v575, %v574
    %v581 = vsel %vm255, %v557, 0
    %v584 = vsel %vm255, %v558, 0
    %v587 = vsel %vm255, %v559, 0
    %v590 = vsel %vm255, %v560, 0
    %592 = vmatpush.bf16.msra.mxu0 0
    %593 = vmatpush.bf16.msra.mxu0 0
    %594 = vmatpush.bf16.msra.mxu0 0
    %595 = vmatpush.bf16.msra.mxu0 0
    %596 = vmatpush.bf16.msra.mxu0 0
    %597 = vmatpush.bf16.msra.mxu0 0
    %598 = vmatpush.bf16.msra.mxu0 %v577
    %599 = vmatpush.bf16.msra.mxu0 %v576
    %600 = vmatmul.bf16.gmra.mxu0 %v581
    %v601 = vpop.f32.mrf.mxu0
    %v602 = vadd.f32 0.0, %v601
    %v603 = vpop.f32.mrf.mxu0
    %v604 = vadd.f32 0.0, %v603
    %605 = vmatmul.bf16.gmra.mxu0 %v584
    %v606 = vpop.f32.mrf.mxu0
    %v607 = vadd.f32 0.0, %v606
    %v608 = vpop.f32.mrf.mxu0
    %v609 = vadd.f32 0.0, %v608
    %610 = vmatmul.bf16.gmra.mxu0 %v587
    %v611 = vpop.f32.mrf.mxu0
    %v612 = vadd.f32 0.0, %v611
    %v613 = vpop.f32.mrf.mxu0
    %v614 = vadd.f32 0.0, %v613
    %615 = vmatmul.bf16.gmra.mxu0 %v590
    %v616 = vpop.f32.mrf.mxu0
    %v617 = vadd.f32 0.0, %v616
    %v618 = vpop.f32.mrf.mxu0
    %v619 = vadd.f32 0.0, %v618
    %620 = vdwg.mxu0
    %v621 = vpack.c.bf16 %v604, %v602
    %v622 = vpack.c.bf16 %v609, %v607
    %v623 = vpack.c.bf16 %v614, %v612
    %v624 = vpack.c.bf16 %v619, %v617
    %v626 = vperm.slane %v567, 0
    %628 = vmatpush.bf16.msra.mxu0 0
    %629 = vmatpush.bf16.msra.mxu0 0
    %630 = vmatpush.bf16.msra.mxu0 0
    %631 = vmatpush.bf16.msra.mxu0 0
    %632 = vmatpush.bf16.msra.mxu0 %v624
    %633 = vmatpush.bf16.msra.mxu0 %v623
    %634 = vmatpush.bf16.msra.mxu0 %v622
    %635 = vmatpush.bf16.msra.mxu0 %v621
    %636 = vmatmul.bf16.gmra.mxu0 %v192
    %v637 = vpop.f32.mrf.mxu0
    %v638 = vadd.f32 %v626, %v637
    %v639 = vpop.f32.mrf.mxu0
    %v640 = vadd.f32 %v626, %v639
    %641 = vmatmul.bf16.gmra.mxu0 %v195
    %v642 = vpop.f32.mrf.mxu0
    %v643 = vadd.f32 %v626, %v642
    %v644 = vpop.f32.mrf.mxu0
    %v645 = vadd.f32 %v626, %v644
    %646 = vmatmul.bf16.gmra.mxu0 %v198
    %v647 = vpop.f32.mrf.mxu0
    %v648 = vadd.f32 %v626, %v647
    %v649 = vpop.f32.mrf.mxu0
    %v650 = vadd.f32 %v626, %v649
    %651 = vmatmul.bf16.gmra.mxu0 %v201
    %v652 = vpop.f32.mrf.mxu0
    %v653 = vadd.f32 %v626, %v652
    %v654 = vpop.f32.mrf.mxu0
    %v655 = vadd.f32 %v626, %v654
    %656 = vdwg.mxu0
    %v657 = vmax.f32 %v638, 0.0
    %v658 = vmax.f32 %v640, 0.0
    %v659 = vmax.f32 %v643, 0.0
    %v660 = vmax.f32 %v645, 0.0
    %v661 = vmax.f32 %v648, 0.0
    %v662 = vmax.f32 %v650, 0.0
    %v663 = vmax.f32 %v653, 0.0
    %v664 = vmax.f32 %v655, 0.0
    %v665 = vpack.c.bf16 %v658, %v657
    %v666 = vpack.c.bf16 %v660, %v659
    %v667 = vpack.c.bf16 %v662, %v661
    %v668 = vpack.c.bf16 %v664, %v663
    %s669 = scalar_lea.vmem [#allocation4], 80
    %v670 = vld [vmem:[%s669] sm:$0xf]
    %v671 = vld [vmem:[%s669 + $0x4] sm:$0xf]
    %v672 = vld [vmem:[%s669 + $0x8] sm:$0xf]
    %v673 = vld [vmem:[%s669 + $0xc] sm:$0xf]
    %s674 = scalar_lea.vmem [#allocation4], 96
    %v675 = vld [vmem:[%s674] sm:$0xf]
    %v676 = vld [vmem:[%s674 + $0x4] sm:$0xf]
    %v677 = vld [vmem:[%s674 + $0x8] sm:$0xf]
    %v678 = vld [vmem:[%s674 + $0xc] sm:$0xf]
    %s679 = scalar_lea.vmem [#allocation6], 5
    %v680 = vld [vmem:[%s679] sm:$0x1]
    %v685 = vunpack.c.l.b16 %v675
    %v686 = vunpack.c.l.b16 %v676
    %v687 = vunpack.c.l.b16 %v677
    %v688 = vunpack.c.l.b16 %v678
    %v689 = vpack.c.b16 %v686, %v685
    %v690 = vpack.c.b16 %v688, %v687
    %v694 = vsel %vm255, %v665, 0
    %v697 = vsel %vm255, %v666, 0
    %v700 = vsel %vm255, %v667, 0
    %v703 = vsel %vm255, %v668, 0
    %705 = vmatpush.bf16.msra.mxu0 0
    %706 = vmatpush.bf16.msra.mxu0 0
    %707 = vmatpush.bf16.msra.mxu0 0
    %708 = vmatpush.bf16.msra.mxu0 0
    %709 = vmatpush.bf16.msra.mxu0 0
    %710 = vmatpush.bf16.msra.mxu0 0
    %711 = vmatpush.bf16.msra.mxu0 %v690
    %712 = vmatpush.bf16.msra.mxu0 %v689
    %713 = vmatmul.bf16.gmra.mxu0 %v694
    %v714 = vpop.f32.mrf.mxu0
    %v715 = vadd.f32 0.0, %v714
    %v716 = vpop.f32.mrf.mxu0
    %v717 = vadd.f32 0.0, %v716
    %718 = vmatmul.bf16.gmra.mxu0 %v697
    %v719 = vpop.f32.mrf.mxu0
    %v720 = vadd.f32 0.0, %v719
    %v721 = vpop.f32.mrf.mxu0
    %v722 = vadd.f32 0.0, %v721
    %723 = vmatmul.bf16.gmra.mxu0 %v700
    %v724 = vpop.f32.mrf.mxu0
    %v725 = vadd.f32 0.0, %v724
    %v726 = vpop.f32.mrf.mxu0
    %v727 = vadd.f32 0.0, %v726
    %728 = vmatmul.bf16.gmra.mxu0 %v703
    %v729 = vpop.f32.mrf.mxu0
    %v730 = vadd.f32 0.0, %v729
    %v731 = vpop.f32.mrf.mxu0
    %v732 = vadd.f32 0.0, %v731
    %733 = vdwg.mxu0
    %v738 = vunpack.c.l.b16 %v670
    %v739 = vunpack.c.l.b16 %v671
    %v740 = vunpack.c.l.b16 %v672
    %v741 = vunpack.c.l.b16 %v673
    %v742 = vpack.c.b16 %v739, %v738
    %v743 = vpack.c.b16 %v741, %v740
    %746 = vmatpush.bf16.msra.mxu0 0
    %747 = vmatpush.bf16.msra.mxu0 0
    %748 = vmatpush.bf16.msra.mxu0 0
    %749 = vmatpush.bf16.msra.mxu0 0
    %750 = vmatpush.bf16.msra.mxu0 0
    %751 = vmatpush.bf16.msra.mxu0 0
    %752 = vmatpush.bf16.msra.mxu0 %v743
    %753 = vmatpush.bf16.msra.mxu0 %v742
    %754 = vmatmul.bf16.gmra.mxu0 %v257
    %v755 = vpop.f32.mrf.mxu0
    %v756 = vadd.f32 %v715, %v755
    %v757 = vpop.f32.mrf.mxu0
    %v758 = vadd.f32 %v717, %v757
    %759 = vmatmul.bf16.gmra.mxu0 %v260
    %v760 = vpop.f32.mrf.mxu0
    %v761 = vadd.f32 %v720, %v760
    %v762 = vpop.f32.mrf.mxu0
    %v763 = vadd.f32 %v722, %v762
    %764 = vmatmul.bf16.gmra.mxu0 %v263
    %v765 = vpop.f32.mrf.mxu0
    %v766 = vadd.f32 %v725, %v765
    %v767 = vpop.f32.mrf.mxu0
    %v768 = vadd.f32 %v727, %v767
    %769 = vmatmul.bf16.gmra.mxu0 %v266
    %v770 = vpop.f32.mrf.mxu0
    %v771 = vadd.f32 %v730, %v770
    %v772 = vpop.f32.mrf.mxu0
    %v773 = vadd.f32 %v732, %v772
    %774 = vdwg.mxu0
    %v775 = vpack.c.bf16 %v758, %v756
    %v776 = vpack.c.bf16 %v763, %v761
    %v777 = vpack.c.bf16 %v768, %v766
    %v778 = vpack.c.bf16 %v773, %v771
    %v780 = vperm.slane %v680, 0
    %v790 = vunpack.c.l.b16 %v76
    %v791 = vunpack.c.l.b16 %v77
    %v792 = vunpack.c.l.b16 %v78
    %v793 = vunpack.c.l.b16 %v79
    %v794 = vunpack.c.l.b16 %v80
    %v795 = vunpack.c.l.b16 %v81
    %v796 = vunpack.c.l.b16 %v82
    %v797 = vunpack.c.l.b16 %v83
    %v798 = vpack.c.b16 %v791, %v790
    %v799 = vpack.c.b16 %v793, %v792
    %v800 = vpack.c.b16 %v795, %v794
    %v801 = vpack.c.b16 %v797, %v796
    %v803 = vsel %vm190, %v798, 0
    %v806 = vsel %vm190, %v799, 0
    %v809 = vsel %vm190, %v800, 0
    %v812 = vsel %vm190, %v801, 0
    %814 = vmatpush.bf16.msra.mxu0 0
    %815 = vmatpush.bf16.msra.mxu0 0
    %816 = vmatpush.bf16.msra.mxu0 0
    %817 = vmatpush.bf16.msra.mxu0 0
    %818 = vmatpush.bf16.msra.mxu0 %v778
    %819 = vmatpush.bf16.msra.mxu0 %v777
    %820 = vmatpush.bf16.msra.mxu0 %v776
    %821 = vmatpush.bf16.msra.mxu0 %v775
    %822 = vmatmul.bf16.gmra.mxu0 %v803
    %v823 = vpop.f32.mrf.mxu0
    %v824 = vadd.f32 %v780, %v823
    %v825 = vpop.f32.mrf.mxu0
    %v826 = vadd.f32 %v780, %v825
    %827 = vmatmul.bf16.gmra.mxu0 %v806
    %v828 = vpop.f32.mrf.mxu0
    %v829 = vadd.f32 %v780, %v828
    %v830 = vpop.f32.mrf.mxu0
    %v831 = vadd.f32 %v780, %v830
    %832 = vmatmul.bf16.gmra.mxu0 %v809
    %v833 = vpop.f32.mrf.mxu0
    %v834 = vadd.f32 %v780, %v833
    %v835 = vpop.f32.mrf.mxu0
    %v836 = vadd.f32 %v780, %v835
    %837 = vmatmul.bf16.gmra.mxu0 %v812
    %v838 = vpop.f32.mrf.mxu0
    %v839 = vadd.f32 %v780, %v838
    %v840 = vpop.f32.mrf.mxu0
    %v841 = vadd.f32 %v780, %v840
    %842 = vdwg.mxu0
    %851 = vrot.lane.b32.xlu0 %v756, 96
    %v852 = vpop.permute.xlu0 %851
    %853 = vrot.lane.b32.xlu0 %v758, 96
    %v854 = vpop.permute.xlu0 %853
    %855 = vrot.lane.b32.xlu0 %v761, 96
    %v856 = vpop.permute.xlu0 %855
    %857 = vrot.lane.b32.xlu0 %v763, 96
    %v858 = vpop.permute.xlu0 %857
    %859 = vrot.lane.b32.xlu0 %v766, 96
    %v860 = vpop.permute.xlu0 %859
    %861 = vrot.lane.b32.xlu0 %v768, 96
    %v862 = vpop.permute.xlu0 %861
    %863 = vrot.lane.b32.xlu0 %v771, 96
    %v864 = vpop.permute.xlu0 %863
    %865 = vrot.lane.b32.xlu0 %v773, 96
    %v866 = vpop.permute.xlu0 %865
    %v875 = vadd.f32 %v824, %v852
    %v876 = vadd.f32 %v826, %v854
    %v877 = vadd.f32 %v829, %v856
    %v878 = vadd.f32 %v831, %v858
    %v879 = vadd.f32 %v834, %v860
    %v880 = vadd.f32 %v836, %v862
    %v881 = vadd.f32 %v839, %v864
    %v882 = vadd.f32 %v841, %v866
    %v883 = vpack.c.bf16 %v876, %v875
    %v884 = vpack.c.bf16 %v878, %v877
    %v885 = vpack.c.bf16 %v880, %v879
    %v886 = vpack.c.bf16 %v882, %v881
    %s887 = scalar_lea.vmem [#allocation4], 112
    %v888 = vld [vmem:[%s887] sm:$0xf]
    %v889 = vld [vmem:[%s887 + $0x4] sm:$0xf]
    %v890 = vld [vmem:[%s887 + $0x8] sm:$0xf]
    %v891 = vld [vmem:[%s887 + $0xc] sm:$0xf]
    %s892 = scalar_lea.vmem [#allocation6], 6
    %v893 = vld [vmem:[%s892] sm:$0x1]
    %v898 = vunpack.c.l.b16 %v888
    %v899 = vunpack.c.l.b16 %v889
    %v900 = vunpack.c.l.b16 %v890
    %v901 = vunpack.c.l.b16 %v891
    %v902 = vpack.c.b16 %v899, %v898
    %v903 = vpack.c.b16 %v901, %v900
    %v907 = vsel %vm255, %v883, 0
    %v910 = vsel %vm255, %v884, 0
    %v913 = vsel %vm255, %v885, 0
    %v916 = vsel %vm255, %v886, 0
    %918 = vmatpush.bf16.msra.mxu0 0
    %919 = vmatpush.bf16.msra.mxu0 0
    %920 = vmatpush.bf16.msra.mxu0 0
    %921 = vmatpush.bf16.msra.mxu0 0
    %922 = vmatpush.bf16.msra.mxu0 0
    %923 = vmatpush.bf16.msra.mxu0 0
    %924 = vmatpush.bf16.msra.mxu0 %v903
    %925 = vmatpush.bf16.msra.mxu0 %v902
    %926 = vmatmul.bf16.gmra.mxu0 %v907
    %v927 = vpop.f32.mrf.mxu0
    %v928 = vadd.f32 0.0, %v927
    %v929 = vpop.f32.mrf.mxu0
    %v930 = vadd.f32 0.0, %v929
    %931 = vmatmul.bf16.gmra.mxu0 %v910
    %v932 = vpop.f32.mrf.mxu0
    %v933 = vadd.f32 0.0, %v932
    %v934 = vpop.f32.mrf.mxu0
    %v935 = vadd.f32 0.0, %v934
    %936 = vmatmul.bf16.gmra.mxu0 %v913
    %v937 = vpop.f32.mrf.mxu0
    %v938 = vadd.f32 0.0, %v937
    %v939 = vpop.f32.mrf.mxu0
    %v940 = vadd.f32 0.0, %v939
    %941 = vmatmul.bf16.gmra.mxu0 %v916
    %v942 = vpop.f32.mrf.mxu0
    %v943 = vadd.f32 0.0, %v942
    %v944 = vpop.f32.mrf.mxu0
    %v945 = vadd.f32 0.0, %v944
    %946 = vdwg.mxu0
    %v947 = vpack.c.bf16 %v930, %v928
    %v948 = vpack.c.bf16 %v935, %v933
    %v949 = vpack.c.bf16 %v940, %v938
    %v950 = vpack.c.bf16 %v945, %v943
    %v952 = vperm.slane %v893, 0
    %954 = vmatpush.bf16.msra.mxu0 0
    %955 = vmatpush.bf16.msra.mxu0 0
    %956 = vmatpush.bf16.msra.mxu0 0
    %957 = vmatpush.bf16.msra.mxu0 0
    %958 = vmatpush.bf16.msra.mxu0 %v950
    %959 = vmatpush.bf16.msra.mxu0 %v949
    %960 = vmatpush.bf16.msra.mxu0 %v948
    %961 = vmatpush.bf16.msra.mxu0 %v947
    %962 = vmatmul.bf16.gmra.mxu0 %v192
    %v963 = vpop.f32.mrf.mxu0
    %v964 = vadd.f32 %v952, %v963
    %v965 = vpop.f32.mrf.mxu0
    %v966 = vadd.f32 %v952, %v965
    %967 = vmatmul.bf16.gmra.mxu0 %v195
    %v968 = vpop.f32.mrf.mxu0
    %v969 = vadd.f32 %v952, %v968
    %v970 = vpop.f32.mrf.mxu0
    %v971 = vadd.f32 %v952, %v970
    %972 = vmatmul.bf16.gmra.mxu0 %v198
    %v973 = vpop.f32.mrf.mxu0
    %v974 = vadd.f32 %v952, %v973
    %v975 = vpop.f32.mrf.mxu0
    %v976 = vadd.f32 %v952, %v975
    %977 = vmatmul.bf16.gmra.mxu0 %v201
    %v978 = vpop.f32.mrf.mxu0
    %v979 = vadd.f32 %v952, %v978
    %v980 = vpop.f32.mrf.mxu0
    %v981 = vadd.f32 %v952, %v980
    %982 = vdwg.mxu0
    %v983 = vpack.c.bf16 %v966, %v964
    %v984 = vpack.c.bf16 %v971, %v969
    %v985 = vpack.c.bf16 %v976, %v974
    %v986 = vpack.c.bf16 %v981, %v979
    %s987 = scalar_lea.vmem [#allocation4], 128
    %v988 = vld [vmem:[%s987] sm:$0xf]
    %v989 = vld [vmem:[%s987 + $0x4] sm:$0xf]
    %v990 = vld [vmem:[%s987 + $0x8] sm:$0xf]
    %v991 = vld [vmem:[%s987 + $0xc] sm:$0xf]
    %s992 = scalar_lea.vmem [#allocation6], 7
    %v993 = vld [vmem:[%s992] sm:$0x1]
    %v998 = vunpack.c.l.b16 %v988
    %v999 = vunpack.c.l.b16 %v989
    %v1000 = vunpack.c.l.b16 %v990
    %v1001 = vunpack.c.l.b16 %v991
    %v1002 = vpack.c.b16 %v999, %v998
    %v1003 = vpack.c.b16 %v1001, %v1000
    %v1007 = vsel %vm255, %v983, 0
    %v1010 = vsel %vm255, %v984, 0
    %v1013 = vsel %vm255, %v985, 0
    %v1016 = vsel %vm255, %v986, 0
    %1018 = vmatpush.bf16.msra.mxu0 0
    %1019 = vmatpush.bf16.msra.mxu0 0
    %1020 = vmatpush.bf16.msra.mxu0 0
    %1021 = vmatpush.bf16.msra.mxu0 0
    %1022 = vmatpush.bf16.msra.mxu0 0
    %1023 = vmatpush.bf16.msra.mxu0 0
    %1024 = vmatpush.bf16.msra.mxu0 %v1003
    %1025 = vmatpush.bf16.msra.mxu0 %v1002
    %1026 = vmatmul.bf16.gmra.mxu0 %v1007
    %v1027 = vpop.f32.mrf.mxu0
    %v1028 = vadd.f32 0.0, %v1027
    %v1029 = vpop.f32.mrf.mxu0
    %v1030 = vadd.f32 0.0, %v1029
    %1031 = vmatmul.bf16.gmra.mxu0 %v1010
    %v1032 = vpop.f32.mrf.mxu0
    %v1033 = vadd.f32 0.0, %v1032
    %v1034 = vpop.f32.mrf.mxu0
    %v1035 = vadd.f32 0.0, %v1034
    %1036 = vmatmul.bf16.gmra.mxu0 %v1013
    %v1037 = vpop.f32.mrf.mxu0
    %v1038 = vadd.f32 0.0, %v1037
    %v1039 = vpop.f32.mrf.mxu0
    %v1040 = vadd.f32 0.0, %v1039
    %1041 = vmatmul.bf16.gmra.mxu0 %v1016
    %v1042 = vpop.f32.mrf.mxu0
    %v1043 = vadd.f32 0.0, %v1042
    %v1044 = vpop.f32.mrf.mxu0
    %v1045 = vadd.f32 0.0, %v1044
    %1046 = vdwg.mxu0
    %v1047 = vpack.c.bf16 %v1030, %v1028
    %v1048 = vpack.c.bf16 %v1035, %v1033
    %v1049 = vpack.c.bf16 %v1040, %v1038
    %v1050 = vpack.c.bf16 %v1045, %v1043
    %v1052 = vperm.slane %v993, 0
    %1054 = vmatpush.bf16.msra.mxu0 0
    %1055 = vmatpush.bf16.msra.mxu0 0
    %1056 = vmatpush.bf16.msra.mxu0 0
    %1057 = vmatpush.bf16.msra.mxu0 0
    %1058 = vmatpush.bf16.msra.mxu0 %v1050
    %1059 = vmatpush.bf16.msra.mxu0 %v1049
    %1060 = vmatpush.bf16.msra.mxu0 %v1048
    %1061 = vmatpush.bf16.msra.mxu0 %v1047
    %1062 = vmatmul.bf16.gmra.mxu0 %v192
    %v1063 = vpop.f32.mrf.mxu0
    %v1064 = vadd.f32 %v1052, %v1063
    %v1065 = vpop.f32.mrf.mxu0
    %v1066 = vadd.f32 %v1052, %v1065
    %1067 = vmatmul.bf16.gmra.mxu0 %v195
    %v1068 = vpop.f32.mrf.mxu0
    %v1069 = vadd.f32 %v1052, %v1068
    %v1070 = vpop.f32.mrf.mxu0
    %v1071 = vadd.f32 %v1052, %v1070
    %1072 = vmatmul.bf16.gmra.mxu0 %v198
    %v1073 = vpop.f32.mrf.mxu0
    %v1074 = vadd.f32 %v1052, %v1073
    %v1075 = vpop.f32.mrf.mxu0
    %v1076 = vadd.f32 %v1052, %v1075
    %1077 = vmatmul.bf16.gmra.mxu0 %v201
    %v1078 = vpop.f32.mrf.mxu0
    %v1079 = vadd.f32 %v1052, %v1078
    %v1080 = vpop.f32.mrf.mxu0
    %v1081 = vadd.f32 %v1052, %v1080
    %1082 = vdwg.mxu0
    %v1083 = vpack.c.bf16 %v1066, %v1064
    %v1084 = vpack.c.bf16 %v1071, %v1069
    %v1085 = vpack.c.bf16 %v1076, %v1074
    %v1086 = vpack.c.bf16 %v1081, %v1079
    %s1087 = scalar_lea.vmem [#allocation4], 144
    %v1088 = vld [vmem:[%s1087] sm:$0xf]
    %v1089 = vld [vmem:[%s1087 + $0x4] sm:$0xf]
    %v1090 = vld [vmem:[%s1087 + $0x8] sm:$0xf]
    %v1091 = vld [vmem:[%s1087 + $0xc] sm:$0xf]
    %s1092 = scalar_lea.vmem [#allocation6], 8
    %v1093 = vld [vmem:[%s1092] sm:$0x1]
    %v1098 = vunpack.c.l.b16 %v1088
    %v1099 = vunpack.c.l.b16 %v1089
    %v1100 = vunpack.c.l.b16 %v1090
    %v1101 = vunpack.c.l.b16 %v1091
    %v1102 = vpack.c.b16 %v1099, %v1098
    %v1103 = vpack.c.b16 %v1101, %v1100
    %v1107 = vsel %vm255, %v1083, 0
    %v1110 = vsel %vm255, %v1084, 0
    %v1113 = vsel %vm255, %v1085, 0
    %v1116 = vsel %vm255, %v1086, 0
    %1118 = vmatpush.bf16.msra.mxu0 0
    %1119 = vmatpush.bf16.msra.mxu0 0
    %1120 = vmatpush.bf16.msra.mxu0 0
    %1121 = vmatpush.bf16.msra.mxu0 0
    %1122 = vmatpush.bf16.msra.mxu0 0
    %1123 = vmatpush.bf16.msra.mxu0 0
    %1124 = vmatpush.bf16.msra.mxu0 %v1103
    %1125 = vmatpush.bf16.msra.mxu0 %v1102
    %1126 = vmatmul.bf16.gmra.mxu0 %v1107
    %v1127 = vpop.f32.mrf.mxu0
    %v1128 = vadd.f32 0.0, %v1127
    %v1129 = vpop.f32.mrf.mxu0
    %v1130 = vadd.f32 0.0, %v1129
    %1131 = vmatmul.bf16.gmra.mxu0 %v1110
    %v1132 = vpop.f32.mrf.mxu0
    %v1133 = vadd.f32 0.0, %v1132
    %v1134 = vpop.f32.mrf.mxu0
    %v1135 = vadd.f32 0.0, %v1134
    %1136 = vmatmul.bf16.gmra.mxu0 %v1113
    %v1137 = vpop.f32.mrf.mxu0
    %v1138 = vadd.f32 0.0, %v1137
    %v1139 = vpop.f32.mrf.mxu0
    %v1140 = vadd.f32 0.0, %v1139
    %1141 = vmatmul.bf16.gmra.mxu0 %v1116
    %v1142 = vpop.f32.mrf.mxu0
    %v1143 = vadd.f32 0.0, %v1142
    %v1144 = vpop.f32.mrf.mxu0
    %v1145 = vadd.f32 0.0, %v1144
    %1146 = vdwg.mxu0
    %v1147 = vpack.c.bf16 %v1130, %v1128
    %v1148 = vpack.c.bf16 %v1135, %v1133
    %v1149 = vpack.c.bf16 %v1140, %v1138
    %v1150 = vpack.c.bf16 %v1145, %v1143
    %v1152 = vperm.slane %v1093, 0
    %1154 = vmatpush.bf16.msra.mxu0 0
    %1155 = vmatpush.bf16.msra.mxu0 0
    %1156 = vmatpush.bf16.msra.mxu0 0
    %1157 = vmatpush.bf16.msra.mxu0 0
    %1158 = vmatpush.bf16.msra.mxu0 %v1150
    %1159 = vmatpush.bf16.msra.mxu0 %v1149
    %1160 = vmatpush.bf16.msra.mxu0 %v1148
    %1161 = vmatpush.bf16.msra.mxu0 %v1147
    %1162 = vmatmul.bf16.gmra.mxu0 %v192
    %v1163 = vpop.f32.mrf.mxu0
    %v1164 = vadd.f32 %v1152, %v1163
    %v1165 = vpop.f32.mrf.mxu0
    %v1166 = vadd.f32 %v1152, %v1165
    %1167 = vmatmul.bf16.gmra.mxu0 %v195
    %v1168 = vpop.f32.mrf.mxu0
    %v1169 = vadd.f32 %v1152, %v1168
    %v1170 = vpop.f32.mrf.mxu0
    %v1171 = vadd.f32 %v1152, %v1170
    %1172 = vmatmul.bf16.gmra.mxu0 %v198
    %v1173 = vpop.f32.mrf.mxu0
    %v1174 = vadd.f32 %v1152, %v1173
    %v1175 = vpop.f32.mrf.mxu0
    %v1176 = vadd.f32 %v1152, %v1175
    %1177 = vmatmul.bf16.gmra.mxu0 %v201
    %v1178 = vpop.f32.mrf.mxu0
    %v1179 = vadd.f32 %v1152, %v1178
    %v1180 = vpop.f32.mrf.mxu0
    %v1181 = vadd.f32 %v1152, %v1180
    %1182 = vdwg.mxu0
    %v1183 = vmax.f32 %v1164, 0.0
    %v1184 = vmax.f32 %v1166, 0.0
    %v1185 = vmax.f32 %v1169, 0.0
    %v1186 = vmax.f32 %v1171, 0.0
    %v1187 = vmax.f32 %v1174, 0.0
    %v1188 = vmax.f32 %v1176, 0.0
    %v1189 = vmax.f32 %v1179, 0.0
    %v1190 = vmax.f32 %v1181, 0.0
    %v1191 = vpack.c.bf16 %v1184, %v1183
    %v1192 = vpack.c.bf16 %v1186, %v1185
    %v1193 = vpack.c.bf16 %v1188, %v1187
    %v1194 = vpack.c.bf16 %v1190, %v1189
    %s1195 = scalar_lea.vmem [#allocation4], 160
    %v1196 = vld [vmem:[%s1195] sm:$0xf]
    %v1197 = vld [vmem:[%s1195 + $0x4] sm:$0xf]
    %v1198 = vld [vmem:[%s1195 + $0x8] sm:$0xf]
    %v1199 = vld [vmem:[%s1195 + $0xc] sm:$0xf]
    %s1200 = scalar_lea.vmem [#allocation6], 9
    %v1201 = vld [vmem:[%s1200] sm:$0x1]
    %v1206 = vunpack.c.l.b16 %v1196
    %v1207 = vunpack.c.l.b16 %v1197
    %v1208 = vunpack.c.l.b16 %v1198
    %v1209 = vunpack.c.l.b16 %v1199
    %v1210 = vpack.c.b16 %v1207, %v1206
    %v1211 = vpack.c.b16 %v1209, %v1208
    %v1215 = vsel %vm255, %v1191, 0
    %v1218 = vsel %vm255, %v1192, 0
    %v1221 = vsel %vm255, %v1193, 0
    %v1224 = vsel %vm255, %v1194, 0
    %1226 = vmatpush.bf16.msra.mxu0 0
    %1227 = vmatpush.bf16.msra.mxu0 0
    %1228 = vmatpush.bf16.msra.mxu0 0
    %1229 = vmatpush.bf16.msra.mxu0 0
    %1230 = vmatpush.bf16.msra.mxu0 0
    %1231 = vmatpush.bf16.msra.mxu0 0
    %1232 = vmatpush.bf16.msra.mxu0 %v1211
    %1233 = vmatpush.bf16.msra.mxu0 %v1210
    %1234 = vmatmul.bf16.gmra.mxu0 %v1215
    %v1235 = vpop.f32.mrf.mxu0
    %v1236 = vadd.f32 0.0, %v1235
    %v1237 = vpop.f32.mrf.mxu0
    %v1238 = vadd.f32 0.0, %v1237
    %1239 = vmatmul.bf16.gmra.mxu0 %v1218
    %v1240 = vpop.f32.mrf.mxu0
    %v1241 = vadd.f32 0.0, %v1240
    %v1242 = vpop.f32.mrf.mxu0
    %v1243 = vadd.f32 0.0, %v1242
    %1244 = vmatmul.bf16.gmra.mxu0 %v1221
    %v1245 = vpop.f32.mrf.mxu0
    %v1246 = vadd.f32 0.0, %v1245
    %v1247 = vpop.f32.mrf.mxu0
    %v1248 = vadd.f32 0.0, %v1247
    %1249 = vmatmul.bf16.gmra.mxu0 %v1224
    %v1250 = vpop.f32.mrf.mxu0
    %v1251 = vadd.f32 0.0, %v1250
    %v1252 = vpop.f32.mrf.mxu0
    %v1253 = vadd.f32 0.0, %v1252
    %1254 = vdwg.mxu0
    %v1255 = vpack.c.bf16 %v1238, %v1236
    %v1256 = vpack.c.bf16 %v1243, %v1241
    %v1257 = vpack.c.bf16 %v1248, %v1246
    %v1258 = vpack.c.bf16 %v1253, %v1251
    %v1260 = vperm.slane %v1201, 0
    %1262 = vmatpush.bf16.msra.mxu0 0
    %1263 = vmatpush.bf16.msra.mxu0 0
    %1264 = vmatpush.bf16.msra.mxu0 0
    %1265 = vmatpush.bf16.msra.mxu0 0
    %1266 = vmatpush.bf16.msra.mxu0 %v1258
    %1267 = vmatpush.bf16.msra.mxu0 %v1257
    %1268 = vmatpush.bf16.msra.mxu0 %v1256
    %1269 = vmatpush.bf16.msra.mxu0 %v1255
    %1270 = vmatmul.bf16.gmra.mxu0 %v192
    %v1271 = vpop.f32.mrf.mxu0
    %v1272 = vadd.f32 %v1260, %v1271
    %v1273 = vpop.f32.mrf.mxu0
    %v1274 = vadd.f32 %v1260, %v1273
    %1275 = vmatmul.bf16.gmra.mxu0 %v195
    %v1276 = vpop.f32.mrf.mxu0
    %v1277 = vadd.f32 %v1260, %v1276
    %v1278 = vpop.f32.mrf.mxu0
    %v1279 = vadd.f32 %v1260, %v1278
    %1280 = vmatmul.bf16.gmra.mxu0 %v198
    %v1281 = vpop.f32.mrf.mxu0
    %v1282 = vadd.f32 %v1260, %v1281
    %v1283 = vpop.f32.mrf.mxu0
    %v1284 = vadd.f32 %v1260, %v1283
    %1285 = vmatmul.bf16.gmra.mxu0 %v201
    %v1286 = vpop.f32.mrf.mxu0
    %v1287 = vadd.f32 %v1260, %v1286
    %v1288 = vpop.f32.mrf.mxu0
    %v1289 = vadd.f32 %v1260, %v1288
    %1290 = vdwg.mxu0
    %v1291 = vmax.f32 %v1272, 0.0
    %v1292 = vmax.f32 %v1274, 0.0
    %v1293 = vmax.f32 %v1277, 0.0
    %v1294 = vmax.f32 %v1279, 0.0
    %v1295 = vmax.f32 %v1282, 0.0
    %v1296 = vmax.f32 %v1284, 0.0
    %v1297 = vmax.f32 %v1287, 0.0
    %v1298 = vmax.f32 %v1289, 0.0
    %v1299 = vpack.c.bf16 %v1292, %v1291
    %v1300 = vpack.c.bf16 %v1294, %v1293
    %v1301 = vpack.c.bf16 %v1296, %v1295
    %v1302 = vpack.c.bf16 %v1298, %v1297
    %s1303 = scalar_lea.vmem [#allocation4], 176
    %v1304 = vld [vmem:[%s1303] sm:$0xf]
    %v1305 = vld [vmem:[%s1303 + $0x4] sm:$0xf]
    %v1306 = vld [vmem:[%s1303 + $0x8] sm:$0xf]
    %v1307 = vld [vmem:[%s1303 + $0xc] sm:$0xf]
    %s1308 = scalar_lea.vmem [#allocation6], 10
    %v1309 = vld [vmem:[%s1308] sm:$0x1]
    %v1314 = vunpack.c.l.b16 %v1304
    %v1315 = vunpack.c.l.b16 %v1305
    %v1316 = vunpack.c.l.b16 %v1306
    %v1317 = vunpack.c.l.b16 %v1307
    %v1318 = vpack.c.b16 %v1315, %v1314
    %v1319 = vpack.c.b16 %v1317, %v1316
    %v1323 = vsel %vm255, %v1299, 0
    %v1326 = vsel %vm255, %v1300, 0
    %v1329 = vsel %vm255, %v1301, 0
    %v1332 = vsel %vm255, %v1302, 0
    %1334 = vmatpush.bf16.msra.mxu0 0
    %1335 = vmatpush.bf16.msra.mxu0 0
    %1336 = vmatpush.bf16.msra.mxu0 0
    %1337 = vmatpush.bf16.msra.mxu0 0
    %1338 = vmatpush.bf16.msra.mxu0 0
    %1339 = vmatpush.bf16.msra.mxu0 0
    %1340 = vmatpush.bf16.msra.mxu0 %v1319
    %1341 = vmatpush.bf16.msra.mxu0 %v1318
    %1342 = vmatmul.bf16.gmra.mxu0 %v1323
    %v1343 = vpop.f32.mrf.mxu0
    %v1344 = vadd.f32 0.0, %v1343
    %v1345 = vpop.f32.mrf.mxu0
    %v1346 = vadd.f32 0.0, %v1345
    %1347 = vmatmul.bf16.gmra.mxu0 %v1326
    %v1348 = vpop.f32.mrf.mxu0
    %v1349 = vadd.f32 0.0, %v1348
    %v1350 = vpop.f32.mrf.mxu0
    %v1351 = vadd.f32 0.0, %v1350
    %1352 = vmatmul.bf16.gmra.mxu0 %v1329
    %v1353 = vpop.f32.mrf.mxu0
    %v1354 = vadd.f32 0.0, %v1353
    %v1355 = vpop.f32.mrf.mxu0
    %v1356 = vadd.f32 0.0, %v1355
    %1357 = vmatmul.bf16.gmra.mxu0 %v1332
    %v1358 = vpop.f32.mrf.mxu0
    %v1359 = vadd.f32 0.0, %v1358
    %v1360 = vpop.f32.mrf.mxu0
    %v1361 = vadd.f32 0.0, %v1360
    %1362 = vdwg.mxu0
    %v1363 = vpack.c.bf16 %v1346, %v1344
    %v1364 = vpack.c.bf16 %v1351, %v1349
    %v1365 = vpack.c.bf16 %v1356, %v1354
    %v1366 = vpack.c.bf16 %v1361, %v1359
    %v1368 = vperm.slane %v1309, 0
    %1370 = vmatpush.bf16.msra.mxu0 0
    %1371 = vmatpush.bf16.msra.mxu0 0
    %1372 = vmatpush.bf16.msra.mxu0 0
    %1373 = vmatpush.bf16.msra.mxu0 0
    %1374 = vmatpush.bf16.msra.mxu0 %v1366
    %1375 = vmatpush.bf16.msra.mxu0 %v1365
    %1376 = vmatpush.bf16.msra.mxu0 %v1364
    %1377 = vmatpush.bf16.msra.mxu0 %v1363
    %1378 = vmatmul.bf16.gmra.mxu0 %v192
    %v1379 = vpop.f32.mrf.mxu0
    %v1380 = vadd.f32 %v1368, %v1379
    %v1381 = vpop.f32.mrf.mxu0
    %v1382 = vadd.f32 %v1368, %v1381
    %1383 = vmatmul.bf16.gmra.mxu0 %v195
    %v1384 = vpop.f32.mrf.mxu0
    %v1385 = vadd.f32 %v1368, %v1384
    %v1386 = vpop.f32.mrf.mxu0
    %v1387 = vadd.f32 %v1368, %v1386
    %1388 = vmatmul.bf16.gmra.mxu0 %v198
    %v1389 = vpop.f32.mrf.mxu0
    %v1390 = vadd.f32 %v1368, %v1389
    %v1391 = vpop.f32.mrf.mxu0
    %v1392 = vadd.f32 %v1368, %v1391
    %1393 = vmatmul.bf16.gmra.mxu0 %v201
    %v1394 = vpop.f32.mrf.mxu0
    %v1395 = vadd.f32 %v1368, %v1394
    %v1396 = vpop.f32.mrf.mxu0
    %v1397 = vadd.f32 %v1368, %v1396
    %1398 = vdwg.mxu0
    %v1399 = vmax.f32 %v1380, 0.0
    %v1400 = vmax.f32 %v1382, 0.0
    %v1401 = vmax.f32 %v1385, 0.0
    %v1402 = vmax.f32 %v1387, 0.0
    %v1403 = vmax.f32 %v1390, 0.0
    %v1404 = vmax.f32 %v1392, 0.0
    %v1405 = vmax.f32 %v1395, 0.0
    %v1406 = vmax.f32 %v1397, 0.0
    %v1407 = vpack.c.bf16 %v1400, %v1399
    %v1408 = vpack.c.bf16 %v1402, %v1401
    %v1409 = vpack.c.bf16 %v1404, %v1403
    %v1410 = vpack.c.bf16 %v1406, %v1405
    %s1411 = scalar_lea.vmem [#allocation4], 192
    %v1412 = vld [vmem:[%s1411] sm:$0xf]
    %v1413 = vld [vmem:[%s1411 + $0x4] sm:$0xf]
    %v1414 = vld [vmem:[%s1411 + $0x8] sm:$0xf]
    %v1415 = vld [vmem:[%s1411 + $0xc] sm:$0xf]
    %s1416 = scalar_lea.vmem [#allocation6], 11
    %v1417 = vld [vmem:[%s1416] sm:$0x1]
    %v1422 = vunpack.c.l.b16 %v1412
    %v1423 = vunpack.c.l.b16 %v1413
    %v1424 = vunpack.c.l.b16 %v1414
    %v1425 = vunpack.c.l.b16 %v1415
    %v1426 = vpack.c.b16 %v1423, %v1422
    %v1427 = vpack.c.b16 %v1425, %v1424
    %v1431 = vsel %vm255, %v1407, 0
    %v1434 = vsel %vm255, %v1408, 0
    %v1437 = vsel %vm255, %v1409, 0
    %v1440 = vsel %vm255, %v1410, 0
    %1442 = vmatpush.bf16.msra.mxu0 0
    %1443 = vmatpush.bf16.msra.mxu0 0
    %1444 = vmatpush.bf16.msra.mxu0 0
    %1445 = vmatpush.bf16.msra.mxu0 0
    %1446 = vmatpush.bf16.msra.mxu0 0
    %1447 = vmatpush.bf16.msra.mxu0 0
    %1448 = vmatpush.bf16.msra.mxu0 %v1427
    %1449 = vmatpush.bf16.msra.mxu0 %v1426
    %1450 = vmatmul.bf16.gmra.mxu0 %v1431
    %v1451 = vpop.f32.mrf.mxu0
    %v1452 = vadd.f32 0.0, %v1451
    %v1453 = vpop.f32.mrf.mxu0
    %v1454 = vadd.f32 0.0, %v1453
    %1455 = vmatmul.bf16.gmra.mxu0 %v1434
    %v1456 = vpop.f32.mrf.mxu0
    %v1457 = vadd.f32 0.0, %v1456
    %v1458 = vpop.f32.mrf.mxu0
    %v1459 = vadd.f32 0.0, %v1458
    %1460 = vmatmul.bf16.gmra.mxu0 %v1437
    %v1461 = vpop.f32.mrf.mxu0
    %v1462 = vadd.f32 0.0, %v1461
    %v1463 = vpop.f32.mrf.mxu0
    %v1464 = vadd.f32 0.0, %v1463
    %1465 = vmatmul.bf16.gmra.mxu0 %v1440
    %v1466 = vpop.f32.mrf.mxu0
    %v1467 = vadd.f32 0.0, %v1466
    %v1468 = vpop.f32.mrf.mxu0
    %v1469 = vadd.f32 0.0, %v1468
    %1470 = vdwg.mxu0
    %v1471 = vpack.c.bf16 %v1454, %v1452
    %v1472 = vpack.c.bf16 %v1459, %v1457
    %v1473 = vpack.c.bf16 %v1464, %v1462
    %v1474 = vpack.c.bf16 %v1469, %v1467
    %v1476 = vperm.slane %v1417, 0
    %1478 = vmatpush.bf16.msra.mxu0 0
    %1479 = vmatpush.bf16.msra.mxu0 0
    %1480 = vmatpush.bf16.msra.mxu0 0
    %1481 = vmatpush.bf16.msra.mxu0 0
    %1482 = vmatpush.bf16.msra.mxu0 %v1474
    %1483 = vmatpush.bf16.msra.mxu0 %v1473
    %1484 = vmatpush.bf16.msra.mxu0 %v1472
    %1485 = vmatpush.bf16.msra.mxu0 %v1471
    %1486 = vmatmul.bf16.gmra.mxu0 %v192
    %v1487 = vpop.f32.mrf.mxu0
    %v1488 = vadd.f32 %v1476, %v1487
    %v1489 = vpop.f32.mrf.mxu0
    %v1490 = vadd.f32 %v1476, %v1489
    %1491 = vmatmul.bf16.gmra.mxu0 %v195
    %v1492 = vpop.f32.mrf.mxu0
    %v1493 = vadd.f32 %v1476, %v1492
    %v1494 = vpop.f32.mrf.mxu0
    %v1495 = vadd.f32 %v1476, %v1494
    %1496 = vmatmul.bf16.gmra.mxu0 %v198
    %v1497 = vpop.f32.mrf.mxu0
    %v1498 = vadd.f32 %v1476, %v1497
    %v1499 = vpop.f32.mrf.mxu0
    %v1500 = vadd.f32 %v1476, %v1499
    %1501 = vmatmul.bf16.gmra.mxu0 %v201
    %v1502 = vpop.f32.mrf.mxu0
    %v1503 = vadd.f32 %v1476, %v1502
    %v1504 = vpop.f32.mrf.mxu0
    %v1505 = vadd.f32 %v1476, %v1504
    %1506 = vdwg.mxu0
    %v1507 = vmax.f32 %v1488, 0.0
    %v1508 = vmax.f32 %v1490, 0.0
    %v1509 = vmax.f32 %v1493, 0.0
    %v1510 = vmax.f32 %v1495, 0.0
    %v1511 = vmax.f32 %v1498, 0.0
    %v1512 = vmax.f32 %v1500, 0.0
    %v1513 = vmax.f32 %v1503, 0.0
    %v1514 = vmax.f32 %v1505, 0.0
    %v1515 = vpack.c.bf16 %v1508, %v1507
    %v1516 = vpack.c.bf16 %v1510, %v1509
    %v1517 = vpack.c.bf16 %v1512, %v1511
    %v1518 = vpack.c.bf16 %v1514, %v1513
    %s1519 = scalar_lea.vmem [#allocation4], 208
    %v1520 = vld [vmem:[%s1519] sm:$0xf]
    %v1521 = vld [vmem:[%s1519 + $0x4] sm:$0xf]
    %v1522 = vld [vmem:[%s1519 + $0x8] sm:$0xf]
    %v1523 = vld [vmem:[%s1519 + $0xc] sm:$0xf]
    %s1524 = scalar_lea.vmem [#allocation4], 224
    %v1525 = vld [vmem:[%s1524] sm:$0xf]
    %v1526 = vld [vmem:[%s1524 + $0x4] sm:$0xf]
    %v1527 = vld [vmem:[%s1524 + $0x8] sm:$0xf]
    %v1528 = vld [vmem:[%s1524 + $0xc] sm:$0xf]
    %s1529 = scalar_lea.vmem [#allocation6], 12
    %v1530 = vld [vmem:[%s1529] sm:$0x1]
    %v1535 = vunpack.c.l.b16 %v1525
    %v1536 = vunpack.c.l.b16 %v1526
    %v1537 = vunpack.c.l.b16 %v1527
    %v1538 = vunpack.c.l.b16 %v1528
    %v1539 = vpack.c.b16 %v1536, %v1535
    %v1540 = vpack.c.b16 %v1538, %v1537
    %v1544 = vsel %vm255, %v1515, 0
    %v1547 = vsel %vm255, %v1516, 0
    %v1550 = vsel %vm255, %v1517, 0
    %v1553 = vsel %vm255, %v1518, 0
    %1555 = vmatpush.bf16.msra.mxu0 0
    %1556 = vmatpush.bf16.msra.mxu0 0
    %1557 = vmatpush.bf16.msra.mxu0 0
    %1558 = vmatpush.bf16.msra.mxu0 0
    %1559 = vmatpush.bf16.msra.mxu0 0
    %1560 = vmatpush.bf16.msra.mxu0 0
    %1561 = vmatpush.bf16.msra.mxu0 %v1540
    %1562 = vmatpush.bf16.msra.mxu0 %v1539
    %1563 = vmatmul.bf16.gmra.mxu0 %v1544
    %v1564 = vpop.f32.mrf.mxu0
    %v1565 = vadd.f32 0.0, %v1564
    %v1566 = vpop.f32.mrf.mxu0
    %v1567 = vadd.f32 0.0, %v1566
    %1568 = vmatmul.bf16.gmra.mxu0 %v1547
    %v1569 = vpop.f32.mrf.mxu0
    %v1570 = vadd.f32 0.0, %v1569
    %v1571 = vpop.f32.mrf.mxu0
    %v1572 = vadd.f32 0.0, %v1571
    %1573 = vmatmul.bf16.gmra.mxu0 %v1550
    %v1574 = vpop.f32.mrf.mxu0
    %v1575 = vadd.f32 0.0, %v1574
    %v1576 = vpop.f32.mrf.mxu0
    %v1577 = vadd.f32 0.0, %v1576
    %1578 = vmatmul.bf16.gmra.mxu0 %v1553
    %v1579 = vpop.f32.mrf.mxu0
    %v1580 = vadd.f32 0.0, %v1579
    %v1581 = vpop.f32.mrf.mxu0
    %v1582 = vadd.f32 0.0, %v1581
    %1583 = vdwg.mxu0
    %v1588 = vunpack.c.l.b16 %v1520
    %v1589 = vunpack.c.l.b16 %v1521
    %v1590 = vunpack.c.l.b16 %v1522
    %v1591 = vunpack.c.l.b16 %v1523
    %v1592 = vpack.c.b16 %v1589, %v1588
    %v1593 = vpack.c.b16 %v1591, %v1590
    %1596 = vmatpush.bf16.msra.mxu0 0
    %1597 = vmatpush.bf16.msra.mxu0 0
    %1598 = vmatpush.bf16.msra.mxu0 0
    %1599 = vmatpush.bf16.msra.mxu0 0
    %1600 = vmatpush.bf16.msra.mxu0 0
    %1601 = vmatpush.bf16.msra.mxu0 0
    %1602 = vmatpush.bf16.msra.mxu0 %v1593
    %1603 = vmatpush.bf16.msra.mxu0 %v1592
    %1604 = vmatmul.bf16.gmra.mxu0 %v1107
    %v1605 = vpop.f32.mrf.mxu0
    %v1606 = vadd.f32 %v1565, %v1605
    %v1607 = vpop.f32.mrf.mxu0
    %v1608 = vadd.f32 %v1567, %v1607
    %1609 = vmatmul.bf16.gmra.mxu0 %v1110
    %v1610 = vpop.f32.mrf.mxu0
    %v1611 = vadd.f32 %v1570, %v1610
    %v1612 = vpop.f32.mrf.mxu0
    %v1613 = vadd.f32 %v1572, %v1612
    %1614 = vmatmul.bf16.gmra.mxu0 %v1113
    %v1615 = vpop.f32.mrf.mxu0
    %v1616 = vadd.f32 %v1575, %v1615
    %v1617 = vpop.f32.mrf.mxu0
    %v1618 = vadd.f32 %v1577, %v1617
    %1619 = vmatmul.bf16.gmra.mxu0 %v1116
    %v1620 = vpop.f32.mrf.mxu0
    %v1621 = vadd.f32 %v1580, %v1620
    %v1622 = vpop.f32.mrf.mxu0
    %v1623 = vadd.f32 %v1582, %v1622
    %1624 = vdwg.mxu0
    %v1625 = vpack.c.bf16 %v1608, %v1606
    %v1626 = vpack.c.bf16 %v1613, %v1611
    %v1627 = vpack.c.bf16 %v1618, %v1616
    %v1628 = vpack.c.bf16 %v1623, %v1621
    %v1630 = vperm.slane %v1530, 0
    %1632 = vmatpush.bf16.msra.mxu0 0
    %1633 = vmatpush.bf16.msra.mxu0 0
    %1634 = vmatpush.bf16.msra.mxu0 0
    %1635 = vmatpush.bf16.msra.mxu0 0
    %1636 = vmatpush.bf16.msra.mxu0 %v1628
    %1637 = vmatpush.bf16.msra.mxu0 %v1627
    %1638 = vmatpush.bf16.msra.mxu0 %v1626
    %1639 = vmatpush.bf16.msra.mxu0 %v1625
    %1640 = vmatmul.bf16.gmra.mxu0 %v803
    %v1641 = vpop.f32.mrf.mxu0
    %v1642 = vadd.f32 %v1630, %v1641
    %v1643 = vpop.f32.mrf.mxu0
    %v1644 = vadd.f32 %v1630, %v1643
    %1645 = vmatmul.bf16.gmra.mxu0 %v806
    %v1646 = vpop.f32.mrf.mxu0
    %v1647 = vadd.f32 %v1630, %v1646
    %v1648 = vpop.f32.mrf.mxu0
    %v1649 = vadd.f32 %v1630, %v1648
    %1650 = vmatmul.bf16.gmra.mxu0 %v809
    %v1651 = vpop.f32.mrf.mxu0
    %v1652 = vadd.f32 %v1630, %v1651
    %v1653 = vpop.f32.mrf.mxu0
    %v1654 = vadd.f32 %v1630, %v1653
    %1655 = vmatmul.bf16.gmra.mxu0 %v812
    %v1656 = vpop.f32.mrf.mxu0
    %v1657 = vadd.f32 %v1630, %v1656
    %v1658 = vpop.f32.mrf.mxu0
    %v1659 = vadd.f32 %v1630, %v1658
    %1660 = vdwg.mxu0
    %1669 = vrot.lane.b32.xlu0 %v1606, 96
    %v1670 = vpop.permute.xlu0 %1669
    %1671 = vrot.lane.b32.xlu0 %v1608, 96
    %v1672 = vpop.permute.xlu0 %1671
    %1673 = vrot.lane.b32.xlu0 %v1611, 96
    %v1674 = vpop.permute.xlu0 %1673
    %1675 = vrot.lane.b32.xlu0 %v1613, 96
    %v1676 = vpop.permute.xlu0 %1675
    %1677 = vrot.lane.b32.xlu0 %v1616, 96
    %v1678 = vpop.permute.xlu0 %1677
    %1679 = vrot.lane.b32.xlu0 %v1618, 96
    %v1680 = vpop.permute.xlu0 %1679
    %1681 = vrot.lane.b32.xlu0 %v1621, 96
    %v1682 = vpop.permute.xlu0 %1681
    %1683 = vrot.lane.b32.xlu0 %v1623, 96
    %v1684 = vpop.permute.xlu0 %1683
    %v1693 = vadd.f32 %v1642, %v1670
    %v1694 = vadd.f32 %v1644, %v1672
    %v1695 = vadd.f32 %v1647, %v1674
    %v1696 = vadd.f32 %v1649, %v1676
    %v1697 = vadd.f32 %v1652, %v1678
    %v1698 = vadd.f32 %v1654, %v1680
    %v1699 = vadd.f32 %v1657, %v1682
    %v1700 = vadd.f32 %v1659, %v1684
    %v1701 = vpack.c.bf16 %v1694, %v1693
    %v1702 = vpack.c.bf16 %v1696, %v1695
    %v1703 = vpack.c.bf16 %v1698, %v1697
    %v1704 = vpack.c.bf16 %v1700, %v1699
    %s1705 = scalar_lea.vmem [#allocation4], 240
    %v1706 = vld [vmem:[%s1705] sm:$0xf]
    %v1707 = vld [vmem:[%s1705 + $0x4] sm:$0xf]
    %v1708 = vld [vmem:[%s1705 + $0x8] sm:$0xf]
    %v1709 = vld [vmem:[%s1705 + $0xc] sm:$0xf]
    %s1710 = scalar_lea.vmem [#allocation6], 13
    %v1711 = vld [vmem:[%s1710] sm:$0x1]
    %v1716 = vunpack.c.l.b16 %v1706
    %v1717 = vunpack.c.l.b16 %v1707
    %v1718 = vunpack.c.l.b16 %v1708
    %v1719 = vunpack.c.l.b16 %v1709
    %v1720 = vpack.c.b16 %v1717, %v1716
    %v1721 = vpack.c.b16 %v1719, %v1718
    %v1725 = vsel %vm255, %v1701, 0
    %v1728 = vsel %vm255, %v1702, 0
    %v1731 = vsel %vm255, %v1703, 0
    %v1734 = vsel %vm255, %v1704, 0
    %1736 = vmatpush.bf16.msra.mxu0 0
    %1737 = vmatpush.bf16.msra.mxu0 0
    %1738 = vmatpush.bf16.msra.mxu0 0
    %1739 = vmatpush.bf16.msra.mxu0 0
    %1740 = vmatpush.bf16.msra.mxu0 0
    %1741 = vmatpush.bf16.msra.mxu0 0
    %1742 = vmatpush.bf16.msra.mxu0 %v1721
    %1743 = vmatpush.bf16.msra.mxu0 %v1720
    %1744 = vmatmul.bf16.gmra.mxu0 %v1725
    %v1745 = vpop.f32.mrf.mxu0
    %v1746 = vadd.f32 0.0, %v1745
    %v1747 = vpop.f32.mrf.mxu0
    %v1748 = vadd.f32 0.0, %v1747
    %1749 = vmatmul.bf16.gmra.mxu0 %v1728
    %v1750 = vpop.f32.mrf.mxu0
    %v1751 = vadd.f32 0.0, %v1750
    %v1752 = vpop.f32.mrf.mxu0
    %v1753 = vadd.f32 0.0, %v1752
    %1754 = vmatmul.bf16.gmra.mxu0 %v1731
    %v1755 = vpop.f32.mrf.mxu0
    %v1756 = vadd.f32 0.0, %v1755
    %v1757 = vpop.f32.mrf.mxu0
    %v1758 = vadd.f32 0.0, %v1757
    %1759 = vmatmul.bf16.gmra.mxu0 %v1734
    %v1760 = vpop.f32.mrf.mxu0
    %v1761 = vadd.f32 0.0, %v1760
    %v1762 = vpop.f32.mrf.mxu0
    %v1763 = vadd.f32 0.0, %v1762
    %1764 = vdwg.mxu0
    %v1765 = vpack.c.bf16 %v1748, %v1746
    %v1766 = vpack.c.bf16 %v1753, %v1751
    %v1767 = vpack.c.bf16 %v1758, %v1756
    %v1768 = vpack.c.bf16 %v1763, %v1761
    %v1770 = vperm.slane %v1711, 0
    %1772 = vmatpush.bf16.msra.mxu0 0
    %1773 = vmatpush.bf16.msra.mxu0 0
    %1774 = vmatpush.bf16.msra.mxu0 0
    %1775 = vmatpush.bf16.msra.mxu0 0
    %1776 = vmatpush.bf16.msra.mxu0 %v1768
    %1777 = vmatpush.bf16.msra.mxu0 %v1767
    %1778 = vmatpush.bf16.msra.mxu0 %v1766
    %1779 = vmatpush.bf16.msra.mxu0 %v1765
    %1780 = vmatmul.bf16.gmra.mxu0 %v192
    %v1781 = vpop.f32.mrf.mxu0
    %v1782 = vadd.f32 %v1770, %v1781
    %v1783 = vpop.f32.mrf.mxu0
    %v1784 = vadd.f32 %v1770, %v1783
    %1785 = vmatmul.bf16.gmra.mxu0 %v195
    %v1786 = vpop.f32.mrf.mxu0
    %v1787 = vadd.f32 %v1770, %v1786
    %v1788 = vpop.f32.mrf.mxu0
    %v1789 = vadd.f32 %v1770, %v1788
    %1790 = vmatmul.bf16.gmra.mxu0 %v198
    %v1791 = vpop.f32.mrf.mxu0
    %v1792 = vadd.f32 %v1770, %v1791
    %v1793 = vpop.f32.mrf.mxu0
    %v1794 = vadd.f32 %v1770, %v1793
    %1795 = vmatmul.bf16.gmra.mxu0 %v201
    %v1796 = vpop.f32.mrf.mxu0
    %v1797 = vadd.f32 %v1770, %v1796
    %v1798 = vpop.f32.mrf.mxu0
    %v1799 = vadd.f32 %v1770, %v1798
    %1800 = vdwg.mxu0
    %v1801 = vpack.c.bf16 %v1784, %v1782
    %v1802 = vpack.c.bf16 %v1789, %v1787
    %v1803 = vpack.c.bf16 %v1794, %v1792
    %v1804 = vpack.c.bf16 %v1799, %v1797
    %s1805 = scalar_lea.vmem [#allocation4], 256
    %v1806 = vld [vmem:[%s1805] sm:$0xf]
    %s1807 = scalar_lea.vmem [#allocation6], 14
    %v1808 = vld [vmem:[%s1807] sm:$0x1]
    %vm1809 = vcmask 64512
    %v1811 = vsel %vm1809, %v1801, 0
    %v1814 = vsel %vm1809, %v1802, 0
    %v1817 = vsel %vm1809, %v1803, 0
    %v1820 = vsel %vm1809, %v1804, 0
    %vm1822 = vcmask 1043456
    %v1824 = vsel %vm1822, %v1806, 0
    %1826 = vmatpush.bf16.msra.mxu0 0
    %1827 = vmatpush.bf16.msra.mxu0 0
    %1828 = vmatpush.bf16.msra.mxu0 0
    %1829 = vmatpush.bf16.msra.mxu0 0
    %1830 = vmatpush.bf16.msra.mxu0 0
    %1831 = vmatpush.bf16.msra.mxu0 0
    %1832 = vmatpush.bf16.msra.mxu0 0
    %1833 = vmatpush.bf16.msra.mxu0 %v1824
    %1834 = vmatmul.bf16.gmra.mxu0 %v1811
    %v1835 = vpop.f32.mrf.mxu0
    %v1836 = vadd.f32 0.0, %v1835
    %v1837 = vpop.f32.mrf.mxu0
    %v1838 = vadd.f32 0.0, %v1837
    %1839 = vmatmul.bf16.gmra.mxu0 %v1814
    %v1840 = vpop.f32.mrf.mxu0
    %v1841 = vadd.f32 0.0, %v1840
    %v1842 = vpop.f32.mrf.mxu0
    %v1843 = vadd.f32 0.0, %v1842
    %1844 = vmatmul.bf16.gmra.mxu0 %v1817
    %v1845 = vpop.f32.mrf.mxu0
    %v1846 = vadd.f32 0.0, %v1845
    %v1847 = vpop.f32.mrf.mxu0
    %v1848 = vadd.f32 0.0, %v1847
    %1849 = vmatmul.bf16.gmra.mxu0 %v1820
    %v1850 = vpop.f32.mrf.mxu0
    %v1851 = vadd.f32 0.0, %v1850
    %v1852 = vpop.f32.mrf.mxu0
    %v1853 = vadd.f32 0.0, %v1852
    %1854 = vdwg.mxu0
    %v1855 = vpack.c.bf16 %v1838, %v1836
    %v1856 = vpack.c.bf16 %v1843, %v1841
    %v1857 = vpack.c.bf16 %v1848, %v1846
    %v1858 = vpack.c.bf16 %v1853, %v1851
    %v1860 = vperm.slane %v1808, 0
    %1862 = vmatpush.bf16.msra.mxu0 0
    %1863 = vmatpush.bf16.msra.mxu0 0
    %1864 = vmatpush.bf16.msra.mxu0 0
    %1865 = vmatpush.bf16.msra.mxu0 0
    %1866 = vmatpush.bf16.msra.mxu0 %v1858
    %1867 = vmatpush.bf16.msra.mxu0 %v1857
    %1868 = vmatpush.bf16.msra.mxu0 %v1856
    %1869 = vmatpush.bf16.msra.mxu0 %v1855
    %1870 = vmatmul.bf16.gmra.mxu0 %v192
    %v1871 = vpop.f32.mrf.mxu0
    %v1872 = vadd.f32 %v1860, %v1871
    %v1873 = vpop.f32.mrf.mxu0
    %v1874 = vadd.f32 %v1860, %v1873
    %1875 = vmatmul.bf16.gmra.mxu0 %v195
    %v1876 = vpop.f32.mrf.mxu0
    %v1877 = vadd.f32 %v1860, %v1876
    %v1878 = vpop.f32.mrf.mxu0
    %v1879 = vadd.f32 %v1860, %v1878
    %1880 = vmatmul.bf16.gmra.mxu0 %v198
    %v1881 = vpop.f32.mrf.mxu0
    %v1882 = vadd.f32 %v1860, %v1881
    %v1883 = vpop.f32.mrf.mxu0
    %v1884 = vadd.f32 %v1860, %v1883
    %1885 = vmatmul.bf16.gmra.mxu0 %v201
    %v1886 = vpop.f32.mrf.mxu0
    %v1887 = vadd.f32 %v1860, %v1886
    %v1888 = vpop.f32.mrf.mxu0
    %v1889 = vadd.f32 %v1860, %v1888
    %1890 = vdwg.mxu0
    %1891 = vst.msk [vmem:[%s5] sm:$0xff] %vm1809, %v1872
    %1892 = vst.msk [vmem:[%s5 + $0x8] sm:$0xff] %vm1809, %v1874
    %1893 = vst.msk [vmem:[%s5 + $0x10] sm:$0xff] %vm1809, %v1877
    %1894 = vst.msk [vmem:[%s5 + $0x18] sm:$0xff] %vm1809, %v1879
    %1895 = vst.msk [vmem:[%s5 + $0x20] sm:$0xff] %vm1809, %v1882
    %1896 = vst.msk [vmem:[%s5 + $0x28] sm:$0xff] %vm1809, %v1884
    %1897 = vst.msk [vmem:[%s5 + $0x30] sm:$0xff] %vm1809, %v1887
    %1898 = vst.msk [vmem:[%s5 + $0x38] sm:$0xff] %vm1809, %v1889
    // Predicated region
    $region34: #{tpu_custom_call.1} parent=1 // pred_check
      _
    $region35: #{tpu_custom_call.1} parent=1 // pred_check_branch
      %1900 = sbr.rel (0) target = $region37
    $region36: #{tpu_custom_call.1} parent=1 // pred_region
      _
    $region37: #{tpu_custom_call.1} parent=1 // pred_fallthru
      _
    // Predicated region
    $region38: #{tpu_custom_call.1} parent=1 // pred_check
      _
    $region39: #{tpu_custom_call.1} parent=1 // pred_check_branch
      %1902 = sbr.rel (0) target = $region41
    $region40: #{tpu_custom_call.1} parent=1 // pred_region
      _
    $region41: #{tpu_custom_call.1} parent=1 // pred_fallthru
      _
    %1903 = vsyncpa [#allocation3], 1
    %1904 = vsyncpa [#allocation5], 1

</llo_original>
